<compile_context>
chip_gen: v5e
topology: v5e:2x2
jax: 0.10.0
libtpu: 0.0.40
codegen_flags: <defaults>
</compile_context>

<pallas_src>
import jax
import jax.numpy as jnp
from jax.experimental import pallas as pl
from jax.experimental.pallas import tpu as pltpu


def _fused_rnn_kernel(*refs):
    """Fused stacked-LSTM + Linear head. Single invocation, everything in VMEM.

    refs = (x, (w_ih_t, w_hh_t, b) * layers_num, w_out_t, b_out, out)
      x       : (B, T, C)    batch_first input
      w_ih_t  : (D, 4H)      input->gates weight (pre-transposed), gates [i,f,g,o]
      w_hh_t  : (H, 4H)      hidden->gates weight (pre-transposed)
      b       : (1, 4H)      b_ih + b_hh
      w_out_t : (H, n_cls)   classifier weight (pre-transposed)
      b_out   : (1, n_cls)
      out     : (B, n_cls)
    """
    x_ref = refs[0]
    out_ref = refs[-1]
    w_out_ref, b_out_ref = refs[-3], refs[-2]
    layer_refs = refs[1:-3]
    layers_num = len(layer_refs) // 3

    B, T, _ = x_ref.shape
    H = layer_refs[1].shape[0]          # w_hh_t is (H, 4H)

    def lstm_cell(gx, h_prev, c_prev, w_hh):
        # gx already holds x_t @ W_ih + (b_ih + b_hh); only the recurrent
        # matmul stays on the serialized per-timestep critical path.
        gates = gx + jnp.dot(h_prev, w_hh, preferred_element_type=jnp.float32)
        sig = jax.nn.sigmoid(gates)                 # one EUP pass over the 4H slab
        i_g = sig[:, 0 * H:1 * H]
        f_g = sig[:, 1 * H:2 * H]
        o_g = sig[:, 3 * H:4 * H]
        g_g = jnp.tanh(gates[:, 2 * H:3 * H])
        c_new = f_g * c_prev + i_g * g_g
        h_new = o_g * jnp.tanh(c_new)
        return h_new, c_new

    h_last = None
    layer_in = None                     # time-major (T*B, H) input for layers >= 1
    for layer in range(layers_num):
        w_ih = layer_refs[3 * layer][...]
        w_hh = layer_refs[3 * layer + 1][...]
        b = layer_refs[3 * layer + 2][...]

        # Hoisted input projection: one MXU matmul over the whole sequence.
        if layer == 0:
            x = x_ref[...]                                     # (B, T, C)
            d_in = x.shape[-1]
            proj = jnp.dot(x.reshape(B * T, d_in), w_ih,
                           preferred_element_type=jnp.float32) + b
            proj = proj.reshape(B, T, 4 * H)                   # batch-major
        else:
            proj = jnp.dot(layer_in, w_ih,
                           preferred_element_type=jnp.float32) + b  # (T*B, 4H) time-major

        h = jnp.zeros((B, H), jnp.float32)
        c = jnp.zeros((B, H), jnp.float32)
        last_layer = layer == layers_num - 1
        h_seq = []
        for t in range(T):              # static unroll (T small): full LLO visibility
            if layer == 0:
                gx = proj[:, t, :]
            else:
                gx = proj[t * B:(t + 1) * B, :]
            h, c = lstm_cell(gx, h, c, w_hh)
            if not last_layer:
                h_seq.append(h)
        if not last_layer:
            layer_in = jnp.concatenate(h_seq, axis=0)          # (T*B, H), time-major
        h_last = h                                             # h_{T-1} of this layer

    # Classifier on the final hidden state of the last layer only
    # (== Linear(r_out[:, -1, :])); no per-timestep HBM writeback at all.
    logits = jnp.dot(h_last, w_out_ref[...],
                     preferred_element_type=jnp.float32) + b_out_ref[...]
    out_ref[...] = logits.astype(out_ref.dtype)


def rnn_forward(x_btc, params):
    """x_btc: (B, T, in_channels) batch_first -> (B, num_classes). Single pallas_call."""
    B = x_btc.shape[0]
    num_classes = params["out"]["w_t"].shape[1]

    flat_args = [x_btc]
    for lp in params["lstm"]:
        flat_args += [lp["w_ih_t"], lp["w_hh_t"], lp["b"]]
    flat_args += [params["out"]["w_t"], params["out"]["b"]]

    vmem = pl.BlockSpec(memory_space=pltpu.MemorySpace.VMEM)   # whole array in VMEM
    return pl.pallas_call(
        _fused_rnn_kernel,
        out_shape=jax.ShapeDtypeStruct((B, num_classes), jnp.float32),
        in_specs=[vmem] * len(flat_args),
        out_specs=vmem,
    )(*flat_args)


def init_params(key, in_channels, hidden_size, layers_num, num_classes):
    """Deterministic params matching PyTorch LSTM/Linear shapes (uniform +/- 1/sqrt(H))."""
    params = {"lstm": [], "out": {}}
    bound = 1.0 / jnp.sqrt(jnp.float32(hidden_size))
    for layer in range(layers_num):
        d_in = in_channels if layer == 0 else hidden_size
        key, k1, k2, k3, k4 = jax.random.split(key, 5)
        w_ih = jax.random.uniform(k1, (4 * hidden_size, d_in), jnp.float32, -bound, bound)
        w_hh = jax.random.uniform(k2, (4 * hidden_size, hidden_size), jnp.float32, -bound, bound)
        b_ih = jax.random.uniform(k3, (4 * hidden_size,), jnp.float32, -bound, bound)
        b_hh = jax.random.uniform(k4, (4 * hidden_size,), jnp.float32, -bound, bound)
        params["lstm"].append({
            "w_ih_t": w_ih.T,                               # (D, 4H)
            "w_hh_t": w_hh.T,                               # (H, 4H)
            "b": (b_ih + b_hh).reshape(1, 4 * hidden_size)  # (1, 4H)
        })
    key, k1, k2 = jax.random.split(key, 3)
    w_out = jax.random.uniform(k1, (num_classes, hidden_size), jnp.float32, -bound, bound)
    b_out = jax.random.uniform(k2, (num_classes,), jnp.float32, -bound, bound)
    params["out"]["w_t"] = w_out.T                          # (H, C)
    params["out"]["b"] = b_out.reshape(1, -1)               # (1, C)
    return params


def rnn_reference(x_btc, params):
    """Pure-JAX reference (lax.scan LSTM stack + linear head) for validation."""
    def one_layer(x_seq, lp):
        B = x_seq.shape[0]
        H = lp["w_hh_t"].shape[0]

        def step(carry, x_t):
            h, c = carry
            gates = x_t @ lp["w_ih_t"] + h @ lp["w_hh_t"] + lp["b"]
            i = jax.nn.sigmoid(gates[:, 0 * H:1 * H])
            f = jax.nn.sigmoid(gates[:, 1 * H:2 * H])
            g = jnp.tanh(gates[:, 2 * H:3 * H])
            o = jax.nn.sigmoid(gates[:, 3 * H:4 * H])
            c = f * c + i * g
            h = o * jnp.tanh(c)
            return (h, c), h

        init = (jnp.zeros((B, H), jnp.float32), jnp.zeros((B, H), jnp.float32))
        _, hs = jax.lax.scan(step, init, jnp.transpose(x_seq, (1, 0, 2)))
        return jnp.transpose(hs, (1, 0, 2))

    h = x_btc
    for lp in params["lstm"]:
        h = one_layer(h, lp)
    return h[:, -1, :] @ params["out"]["w_t"] + params["out"]["b"]


if __name__ == "__main__":
    # Small shapes consistent with the module's forward pass.
    batch = 2
    seq = 8
    in_channels = 16
    hidden_size = 32
    layers_num = 2
    num_classes = 10

    key = jax.random.PRNGKey(0)
    key, xkey = jax.random.split(key)
    x = jax.random.normal(xkey, (batch, seq, in_channels), jnp.float32)

    params = init_params(key, in_channels, hidden_size, layers_num, num_classes)

    out = jax.block_until_ready(rnn_forward(x, params))
    assert out.shape == (batch, num_classes)

    ref = rnn_reference(x, params)
    assert jnp.allclose(out, ref, atol=1e-4, rtol=1e-4), (out, ref)

    print("KERNEL_OK")
</pallas_src>

<mosaic_0001>
module attributes {stable_mosaic.version = 11 : i64} {
  func.func @_fused_rnn_kernel(%arg0: memref<2x8x16xf32, #tpu.memory_space<vmem>>, %arg1: memref<16x128xf32, #tpu.memory_space<vmem>>, %arg2: memref<32x128xf32, #tpu.memory_space<vmem>>, %arg3: memref<1x128xf32, #tpu.memory_space<vmem>>, %arg4: memref<32x128xf32, #tpu.memory_space<vmem>>, %arg5: memref<32x128xf32, #tpu.memory_space<vmem>>, %arg6: memref<1x128xf32, #tpu.memory_space<vmem>>, %arg7: memref<32x10xf32, #tpu.memory_space<vmem>>, %arg8: memref<1x10xf32, #tpu.memory_space<vmem>>, %arg9: memref<2x10xf32, #tpu.memory_space<vmem>>) attributes {dimension_semantics = [], scalar_prefetch = 0 : i64, scratch_operands = 0 : i64, tpu.core_type = #tpu.core_type<tc>} {
    %c0 = arith.constant 0 : index
    %c0_0 = arith.constant 0 : index
    %0 = vector.load %arg1[%c0, %c0_0] : memref<16x128xf32, #tpu.memory_space<vmem>>, vector<16x128xf32>
    %c0_1 = arith.constant 0 : index
    %c0_2 = arith.constant 0 : index
    %1 = vector.load %arg2[%c0_1, %c0_2] : memref<32x128xf32, #tpu.memory_space<vmem>>, vector<32x128xf32>
    %c0_3 = arith.constant 0 : index
    %c0_4 = arith.constant 0 : index
    %2 = vector.load %arg3[%c0_3, %c0_4] : memref<1x128xf32, #tpu.memory_space<vmem>>, vector<1x128xf32>
    %c0_5 = arith.constant 0 : index
    %c0_6 = arith.constant 0 : index
    %c0_7 = arith.constant 0 : index
    %3 = vector.load %arg0[%c0_5, %c0_6, %c0_7] : memref<2x8x16xf32, #tpu.memory_space<vmem>>, vector<2x8x16xf32>
    %4 = vector.shape_cast %3 : vector<2x8x16xf32> to vector<16x16xf32>
    %cst = arith.constant dense<0.000000e+00> : vector<16x128xf32>
    %5 = tpu.matmul %4, %0, %cst {dimension_numbers = #tpu.dot_dimension_numbers<[1], [0], [0], [1], [0, 0, 1, 1], [], []>} : vector<16x16xf32>, vector<16x128xf32>, vector<16x128xf32> -> vector<16x128xf32>
    %6 = vector.broadcast %2 : vector<1x128xf32> to vector<16x128xf32>
    %7 = arith.addf %5, %6 : vector<16x128xf32>
    %8 = vector.shape_cast %7 : vector<16x128xf32> to vector<2x8x128xf32>
    %cst_8 = arith.constant 0.000000e+00 : f32
    %9 = vector.broadcast %cst_8 : f32 to vector<2x32xf32>
    %cst_9 = arith.constant 0.000000e+00 : f32
    %10 = vector.broadcast %cst_9 : f32 to vector<2x32xf32>
    %11 = vector.extract_strided_slice %8 {offsets = [0, 0, 0], sizes = [2, 1, 128], strides = [1, 1, 1]} : vector<2x8x128xf32> to vector<2x1x128xf32>
    %12 = vector.shape_cast %11 : vector<2x1x128xf32> to vector<2x128xf32>
    %cst_10 = arith.constant dense<0.000000e+00> : vector<2x128xf32>
    %13 = tpu.matmul %9, %1, %cst_10 {dimension_numbers = #tpu.dot_dimension_numbers<[1], [0], [0], [1], [0, 0, 1, 1], [], []>} : vector<2x32xf32>, vector<32x128xf32>, vector<2x128xf32> -> vector<2x128xf32>
    %14 = arith.addf %12, %13 : vector<2x128xf32>
    %15 = arith.negf %14 : vector<2x128xf32>
    %16 = math.exp %15 : vector<2x128xf32>
    %cst_11 = arith.constant 1.000000e+00 : f32
    %17 = vector.broadcast %cst_11 : f32 to vector<2x128xf32>
    %18 = arith.addf %17, %16 : vector<2x128xf32>
    %19 = arith.divf %17, %18 : vector<2x128xf32>
    %20 = vector.extract_strided_slice %19 {offsets = [0, 0], sizes = [2, 32], strides = [1, 1]} : vector<2x128xf32> to vector<2x32xf32>
    %21 = vector.extract_strided_slice %19 {offsets = [0, 32], sizes = [2, 32], strides = [1, 1]} : vector<2x128xf32> to vector<2x32xf32>
    %22 = vector.extract_strided_slice %19 {offsets = [0, 96], sizes = [2, 32], strides = [1, 1]} : vector<2x128xf32> to vector<2x32xf32>
    %23 = vector.extract_strided_slice %14 {offsets = [0, 64], sizes = [2, 32], strides = [1, 1]} : vector<2x128xf32> to vector<2x32xf32>
    %24 = math.tanh %23 : vector<2x32xf32>
    %25 = arith.mulf %21, %10 : vector<2x32xf32>
    %26 = arith.mulf %20, %24 : vector<2x32xf32>
    %27 = arith.addf %25, %26 : vector<2x32xf32>
    %28 = math.tanh %27 : vector<2x32xf32>
    %29 = arith.mulf %22, %28 : vector<2x32xf32>
    %30 = vector.extract_strided_slice %8 {offsets = [0, 1, 0], sizes = [2, 1, 128], strides = [1, 1, 1]} : vector<2x8x128xf32> to vector<2x1x128xf32>
    %31 = vector.shape_cast %30 : vector<2x1x128xf32> to vector<2x128xf32>
    %cst_12 = arith.constant dense<0.000000e+00> : vector<2x128xf32>
    %32 = tpu.matmul %29, %1, %cst_12 {dimension_numbers = #tpu.dot_dimension_numbers<[1], [0], [0], [1], [0, 0, 1, 1], [], []>} : vector<2x32xf32>, vector<32x128xf32>, vector<2x128xf32> -> vector<2x128xf32>
    %33 = arith.addf %31, %32 : vector<2x128xf32>
    %34 = arith.negf %33 : vector<2x128xf32>
    %35 = math.exp %34 : vector<2x128xf32>
    %cst_13 = arith.constant 1.000000e+00 : f32
    %36 = vector.broadcast %cst_13 : f32 to vector<2x128xf32>
    %37 = arith.addf %36, %35 : vector<2x128xf32>
    %38 = arith.divf %36, %37 : vector<2x128xf32>
    %39 = vector.extract_strided_slice %38 {offsets = [0, 0], sizes = [2, 32], strides = [1, 1]} : vector<2x128xf32> to vector<2x32xf32>
    %40 = vector.extract_strided_slice %38 {offsets = [0, 32], sizes = [2, 32], strides = [1, 1]} : vector<2x128xf32> to vector<2x32xf32>
    %41 = vector.extract_strided_slice %38 {offsets = [0, 96], sizes = [2, 32], strides = [1, 1]} : vector<2x128xf32> to vector<2x32xf32>
    %42 = vector.extract_strided_slice %33 {offsets = [0, 64], sizes = [2, 32], strides = [1, 1]} : vector<2x128xf32> to vector<2x32xf32>
    %43 = math.tanh %42 : vector<2x32xf32>
    %44 = arith.mulf %40, %27 : vector<2x32xf32>
    %45 = arith.mulf %39, %43 : vector<2x32xf32>
    %46 = arith.addf %44, %45 : vector<2x32xf32>
    %47 = math.tanh %46 : vector<2x32xf32>
    %48 = arith.mulf %41, %47 : vector<2x32xf32>
    %49 = vector.extract_strided_slice %8 {offsets = [0, 2, 0], sizes = [2, 1, 128], strides = [1, 1, 1]} : vector<2x8x128xf32> to vector<2x1x128xf32>
    %50 = vector.shape_cast %49 : vector<2x1x128xf32> to vector<2x128xf32>
    %cst_14 = arith.constant dense<0.000000e+00> : vector<2x128xf32>
    %51 = tpu.matmul %48, %1, %cst_14 {dimension_numbers = #tpu.dot_dimension_numbers<[1], [0], [0], [1], [0, 0, 1, 1], [], []>} : vector<2x32xf32>, vector<32x128xf32>, vector<2x128xf32> -> vector<2x128xf32>
    %52 = arith.addf %50, %51 : vector<2x128xf32>
    %53 = arith.negf %52 : vector<2x128xf32>
    %54 = math.exp %53 : vector<2x128xf32>
    %cst_15 = arith.constant 1.000000e+00 : f32
    %55 = vector.broadcast %cst_15 : f32 to vector<2x128xf32>
    %56 = arith.addf %55, %54 : vector<2x128xf32>
    %57 = arith.divf %55, %56 : vector<2x128xf32>
    %58 = vector.extract_strided_slice %57 {offsets = [0, 0], sizes = [2, 32], strides = [1, 1]} : vector<2x128xf32> to vector<2x32xf32>
    %59 = vector.extract_strided_slice %57 {offsets = [0, 32], sizes = [2, 32], strides = [1, 1]} : vector<2x128xf32> to vector<2x32xf32>
    %60 = vector.extract_strided_slice %57 {offsets = [0, 96], sizes = [2, 32], strides = [1, 1]} : vector<2x128xf32> to vector<2x32xf32>
    %61 = vector.extract_strided_slice %52 {offsets = [0, 64], sizes = [2, 32], strides = [1, 1]} : vector<2x128xf32> to vector<2x32xf32>
    %62 = math.tanh %61 : vector<2x32xf32>
    %63 = arith.mulf %59, %46 : vector<2x32xf32>
    %64 = arith.mulf %58, %62 : vector<2x32xf32>
    %65 = arith.addf %63, %64 : vector<2x32xf32>
    %66 = math.tanh %65 : vector<2x32xf32>
    %67 = arith.mulf %60, %66 : vector<2x32xf32>
    %68 = vector.extract_strided_slice %8 {offsets = [0, 3, 0], sizes = [2, 1, 128], strides = [1, 1, 1]} : vector<2x8x128xf32> to vector<2x1x128xf32>
    %69 = vector.shape_cast %68 : vector<2x1x128xf32> to vector<2x128xf32>
    %cst_16 = arith.constant dense<0.000000e+00> : vector<2x128xf32>
    %70 = tpu.matmul %67, %1, %cst_16 {dimension_numbers = #tpu.dot_dimension_numbers<[1], [0], [0], [1], [0, 0, 1, 1], [], []>} : vector<2x32xf32>, vector<32x128xf32>, vector<2x128xf32> -> vector<2x128xf32>
    %71 = arith.addf %69, %70 : vector<2x128xf32>
    %72 = arith.negf %71 : vector<2x128xf32>
    %73 = math.exp %72 : vector<2x128xf32>
    %cst_17 = arith.constant 1.000000e+00 : f32
    %74 = vector.broadcast %cst_17 : f32 to vector<2x128xf32>
    %75 = arith.addf %74, %73 : vector<2x128xf32>
    %76 = arith.divf %74, %75 : vector<2x128xf32>
    %77 = vector.extract_strided_slice %76 {offsets = [0, 0], sizes = [2, 32], strides = [1, 1]} : vector<2x128xf32> to vector<2x32xf32>
    %78 = vector.extract_strided_slice %76 {offsets = [0, 32], sizes = [2, 32], strides = [1, 1]} : vector<2x128xf32> to vector<2x32xf32>
    %79 = vector.extract_strided_slice %76 {offsets = [0, 96], sizes = [2, 32], strides = [1, 1]} : vector<2x128xf32> to vector<2x32xf32>
    %80 = vector.extract_strided_slice %71 {offsets = [0, 64], sizes = [2, 32], strides = [1, 1]} : vector<2x128xf32> to vector<2x32xf32>
    %81 = math.tanh %80 : vector<2x32xf32>
    %82 = arith.mulf %78, %65 : vector<2x32xf32>
    %83 = arith.mulf %77, %81 : vector<2x32xf32>
    %84 = arith.addf %82, %83 : vector<2x32xf32>
    %85 = math.tanh %84 : vector<2x32xf32>
    %86 = arith.mulf %79, %85 : vector<2x32xf32>
    %87 = vector.extract_strided_slice %8 {offsets = [0, 4, 0], sizes = [2, 1, 128], strides = [1, 1, 1]} : vector<2x8x128xf32> to vector<2x1x128xf32>
    %88 = vector.shape_cast %87 : vector<2x1x128xf32> to vector<2x128xf32>
    %cst_18 = arith.constant dense<0.000000e+00> : vector<2x128xf32>
    %89 = tpu.matmul %86, %1, %cst_18 {dimension_numbers = #tpu.dot_dimension_numbers<[1], [0], [0], [1], [0, 0, 1, 1], [], []>} : vector<2x32xf32>, vector<32x128xf32>, vector<2x128xf32> -> vector<2x128xf32>
    %90 = arith.addf %88, %89 : vector<2x128xf32>
    %91 = arith.negf %90 : vector<2x128xf32>
    %92 = math.exp %91 : vector<2x128xf32>
    %cst_19 = arith.constant 1.000000e+00 : f32
    %93 = vector.broadcast %cst_19 : f32 to vector<2x128xf32>
    %94 = arith.addf %93, %92 : vector<2x128xf32>
    %95 = arith.divf %93, %94 : vector<2x128xf32>
    %96 = vector.extract_strided_slice %95 {offsets = [0, 0], sizes = [2, 32], strides = [1, 1]} : vector<2x128xf32> to vector<2x32xf32>
    %97 = vector.extract_strided_slice %95 {offsets = [0, 32], sizes = [2, 32], strides = [1, 1]} : vector<2x128xf32> to vector<2x32xf32>
    %98 = vector.extract_strided_slice %95 {offsets = [0, 96], sizes = [2, 32], strides = [1, 1]} : vector<2x128xf32> to vector<2x32xf32>
    %99 = vector.extract_strided_slice %90 {offsets = [0, 64], sizes = [2, 32], strides = [1, 1]} : vector<2x128xf32> to vector<2x32xf32>
    %100 = math.tanh %99 : vector<2x32xf32>
    %101 = arith.mulf %97, %84 : vector<2x32xf32>
    %102 = arith.mulf %96, %100 : vector<2x32xf32>
    %103 = arith.addf %101, %102 : vector<2x32xf32>
    %104 = math.tanh %103 : vector<2x32xf32>
    %105 = arith.mulf %98, %104 : vector<2x32xf32>
    %106 = vector.extract_strided_slice %8 {offsets = [0, 5, 0], sizes = [2, 1, 128], strides = [1, 1, 1]} : vector<2x8x128xf32> to vector<2x1x128xf32>
    %107 = vector.shape_cast %106 : vector<2x1x128xf32> to vector<2x128xf32>
    %cst_20 = arith.constant dense<0.000000e+00> : vector<2x128xf32>
    %108 = tpu.matmul %105, %1, %cst_20 {dimension_numbers = #tpu.dot_dimension_numbers<[1], [0], [0], [1], [0, 0, 1, 1], [], []>} : vector<2x32xf32>, vector<32x128xf32>, vector<2x128xf32> -> vector<2x128xf32>
    %109 = arith.addf %107, %108 : vector<2x128xf32>
    %110 = arith.negf %109 : vector<2x128xf32>
    %111 = math.exp %110 : vector<2x128xf32>
    %cst_21 = arith.constant 1.000000e+00 : f32
    %112 = vector.broadcast %cst_21 : f32 to vector<2x128xf32>
    %113 = arith.addf %112, %111 : vector<2x128xf32>
    %114 = arith.divf %112, %113 : vector<2x128xf32>
    %115 = vector.extract_strided_slice %114 {offsets = [0, 0], sizes = [2, 32], strides = [1, 1]} : vector<2x128xf32> to vector<2x32xf32>
    %116 = vector.extract_strided_slice %114 {offsets = [0, 32], sizes = [2, 32], strides = [1, 1]} : vector<2x128xf32> to vector<2x32xf32>
    %117 = vector.extract_strided_slice %114 {offsets = [0, 96], sizes = [2, 32], strides = [1, 1]} : vector<2x128xf32> to vector<2x32xf32>
    %118 = vector.extract_strided_slice %109 {offsets = [0, 64], sizes = [2, 32], strides = [1, 1]} : vector<2x128xf32> to vector<2x32xf32>
    %119 = math.tanh %118 : vector<2x32xf32>
    %120 = arith.mulf %116, %103 : vector<2x32xf32>
    %121 = arith.mulf %115, %119 : vector<2x32xf32>
    %122 = arith.addf %120, %121 : vector<2x32xf32>
    %123 = math.tanh %122 : vector<2x32xf32>
    %124 = arith.mulf %117, %123 : vector<2x32xf32>
    %125 = vector.extract_strided_slice %8 {offsets = [0, 6, 0], sizes = [2, 1, 128], strides = [1, 1, 1]} : vector<2x8x128xf32> to vector<2x1x128xf32>
    %126 = vector.shape_cast %125 : vector<2x1x128xf32> to vector<2x128xf32>
    %cst_22 = arith.constant dense<0.000000e+00> : vector<2x128xf32>
    %127 = tpu.matmul %124, %1, %cst_22 {dimension_numbers = #tpu.dot_dimension_numbers<[1], [0], [0], [1], [0, 0, 1, 1], [], []>} : vector<2x32xf32>, vector<32x128xf32>, vector<2x128xf32> -> vector<2x128xf32>
    %128 = arith.addf %126, %127 : vector<2x128xf32>
    %129 = arith.negf %128 : vector<2x128xf32>
    %130 = math.exp %129 : vector<2x128xf32>
    %cst_23 = arith.constant 1.000000e+00 : f32
    %131 = vector.broadcast %cst_23 : f32 to vector<2x128xf32>
    %132 = arith.addf %131, %130 : vector<2x128xf32>
    %133 = arith.divf %131, %132 : vector<2x128xf32>
    %134 = vector.extract_strided_slice %133 {offsets = [0, 0], sizes = [2, 32], strides = [1, 1]} : vector<2x128xf32> to vector<2x32xf32>
    %135 = vector.extract_strided_slice %133 {offsets = [0, 32], sizes = [2, 32], strides = [1, 1]} : vector<2x128xf32> to vector<2x32xf32>
    %136 = vector.extract_strided_slice %133 {offsets = [0, 96], sizes = [2, 32], strides = [1, 1]} : vector<2x128xf32> to vector<2x32xf32>
    %137 = vector.extract_strided_slice %128 {offsets = [0, 64], sizes = [2, 32], strides = [1, 1]} : vector<2x128xf32> to vector<2x32xf32>
    %138 = math.tanh %137 : vector<2x32xf32>
    %139 = arith.mulf %135, %122 : vector<2x32xf32>
    %140 = arith.mulf %134, %138 : vector<2x32xf32>
    %141 = arith.addf %139, %140 : vector<2x32xf32>
    %142 = math.tanh %141 : vector<2x32xf32>
    %143 = arith.mulf %136, %142 : vector<2x32xf32>
    %144 = vector.extract_strided_slice %8 {offsets = [0, 7, 0], sizes = [2, 1, 128], strides = [1, 1, 1]} : vector<2x8x128xf32> to vector<2x1x128xf32>
    %145 = vector.shape_cast %144 : vector<2x1x128xf32> to vector<2x128xf32>
    %cst_24 = arith.constant dense<0.000000e+00> : vector<2x128xf32>
    %146 = tpu.matmul %143, %1, %cst_24 {dimension_numbers = #tpu.dot_dimension_numbers<[1], [0], [0], [1], [0, 0, 1, 1], [], []>} : vector<2x32xf32>, vector<32x128xf32>, vector<2x128xf32> -> vector<2x128xf32>
    %147 = arith.addf %145, %146 : vector<2x128xf32>
    %148 = arith.negf %147 : vector<2x128xf32>
    %149 = math.exp %148 : vector<2x128xf32>
    %cst_25 = arith.constant 1.000000e+00 : f32
    %150 = vector.broadcast %cst_25 : f32 to vector<2x128xf32>
    %151 = arith.addf %150, %149 : vector<2x128xf32>
    %152 = arith.divf %150, %151 : vector<2x128xf32>
    %153 = vector.extract_strided_slice %152 {offsets = [0, 0], sizes = [2, 32], strides = [1, 1]} : vector<2x128xf32> to vector<2x32xf32>
    %154 = vector.extract_strided_slice %152 {offsets = [0, 32], sizes = [2, 32], strides = [1, 1]} : vector<2x128xf32> to vector<2x32xf32>
    %155 = vector.extract_strided_slice %152 {offsets = [0, 96], sizes = [2, 32], strides = [1, 1]} : vector<2x128xf32> to vector<2x32xf32>
    %156 = vector.extract_strided_slice %147 {offsets = [0, 64], sizes = [2, 32], strides = [1, 1]} : vector<2x128xf32> to vector<2x32xf32>
    %157 = math.tanh %156 : vector<2x32xf32>
    %158 = arith.mulf %154, %141 : vector<2x32xf32>
    %159 = arith.mulf %153, %157 : vector<2x32xf32>
    %160 = arith.addf %158, %159 : vector<2x32xf32>
    %161 = math.tanh %160 : vector<2x32xf32>
    %162 = arith.mulf %155, %161 : vector<2x32xf32>
    %163 = tpu.concatenate %29, %48, %67, %86, %105, %124, %143, %162 in 0 : vector<2x32xf32>, vector<2x32xf32>, vector<2x32xf32>, vector<2x32xf32>, vector<2x32xf32>, vector<2x32xf32>, vector<2x32xf32>, vector<2x32xf32> -> vector<16x32xf32>
    %c0_26 = arith.constant 0 : index
    %c0_27 = arith.constant 0 : index
    %164 = vector.load %arg4[%c0_26, %c0_27] : memref<32x128xf32, #tpu.memory_space<vmem>>, vector<32x128xf32>
    %c0_28 = arith.constant 0 : index
    %c0_29 = arith.constant 0 : index
    %165 = vector.load %arg5[%c0_28, %c0_29] : memref<32x128xf32, #tpu.memory_space<vmem>>, vector<32x128xf32>
    %c0_30 = arith.constant 0 : index
    %c0_31 = arith.constant 0 : index
    %166 = vector.load %arg6[%c0_30, %c0_31] : memref<1x128xf32, #tpu.memory_space<vmem>>, vector<1x128xf32>
    %cst_32 = arith.constant dense<0.000000e+00> : vector<16x128xf32>
    %167 = tpu.matmul %163, %164, %cst_32 {dimension_numbers = #tpu.dot_dimension_numbers<[1], [0], [0], [1], [0, 0, 1, 1], [], []>} : vector<16x32xf32>, vector<32x128xf32>, vector<16x128xf32> -> vector<16x128xf32>
    %168 = vector.broadcast %166 : vector<1x128xf32> to vector<16x128xf32>
    %169 = arith.addf %167, %168 : vector<16x128xf32>
    %cst_33 = arith.constant 0.000000e+00 : f32
    %170 = vector.broadcast %cst_33 : f32 to vector<2x32xf32>
    %cst_34 = arith.constant 0.000000e+00 : f32
    %171 = vector.broadcast %cst_34 : f32 to vector<2x32xf32>
    %172 = vector.extract_strided_slice %169 {offsets = [0, 0], sizes = [2, 128], strides = [1, 1]} : vector<16x128xf32> to vector<2x128xf32>
    %cst_35 = arith.constant dense<0.000000e+00> : vector<2x128xf32>
    %173 = tpu.matmul %170, %165, %cst_35 {dimension_numbers = #tpu.dot_dimension_numbers<[1], [0], [0], [1], [0, 0, 1, 1], [], []>} : vector<2x32xf32>, vector<32x128xf32>, vector<2x128xf32> -> vector<2x128xf32>
    %174 = arith.addf %172, %173 : vector<2x128xf32>
    %175 = arith.negf %174 : vector<2x128xf32>
    %176 = math.exp %175 : vector<2x128xf32>
    %cst_36 = arith.constant 1.000000e+00 : f32
    %177 = vector.broadcast %cst_36 : f32 to vector<2x128xf32>
    %178 = arith.addf %177, %176 : vector<2x128xf32>
    %179 = arith.divf %177, %178 : vector<2x128xf32>
    %180 = vector.extract_strided_slice %179 {offsets = [0, 0], sizes = [2, 32], strides = [1, 1]} : vector<2x128xf32> to vector<2x32xf32>
    %181 = vector.extract_strided_slice %179 {offsets = [0, 32], sizes = [2, 32], strides = [1, 1]} : vector<2x128xf32> to vector<2x32xf32>
    %182 = vector.extract_strided_slice %179 {offsets = [0, 96], sizes = [2, 32], strides = [1, 1]} : vector<2x128xf32> to vector<2x32xf32>
    %183 = vector.extract_strided_slice %174 {offsets = [0, 64], sizes = [2, 32], strides = [1, 1]} : vector<2x128xf32> to vector<2x32xf32>
    %184 = math.tanh %183 : vector<2x32xf32>
    %185 = arith.mulf %181, %171 : vector<2x32xf32>
    %186 = arith.mulf %180, %184 : vector<2x32xf32>
    %187 = arith.addf %185, %186 : vector<2x32xf32>
    %188 = math.tanh %187 : vector<2x32xf32>
    %189 = arith.mulf %182, %188 : vector<2x32xf32>
    %190 = vector.extract_strided_slice %169 {offsets = [2, 0], sizes = [2, 128], strides = [1, 1]} : vector<16x128xf32> to vector<2x128xf32>
    %cst_37 = arith.constant dense<0.000000e+00> : vector<2x128xf32>
    %191 = tpu.matmul %189, %165, %cst_37 {dimension_numbers = #tpu.dot_dimension_numbers<[1], [0], [0], [1], [0, 0, 1, 1], [], []>} : vector<2x32xf32>, vector<32x128xf32>, vector<2x128xf32> -> vector<2x128xf32>
    %192 = arith.addf %190, %191 : vector<2x128xf32>
    %193 = arith.negf %192 : vector<2x128xf32>
    %194 = math.exp %193 : vector<2x128xf32>
    %cst_38 = arith.constant 1.000000e+00 : f32
    %195 = vector.broadcast %cst_38 : f32 to vector<2x128xf32>
    %196 = arith.addf %195, %194 : vector<2x128xf32>
    %197 = arith.divf %195, %196 : vector<2x128xf32>
    %198 = vector.extract_strided_slice %197 {offsets = [0, 0], sizes = [2, 32], strides = [1, 1]} : vector<2x128xf32> to vector<2x32xf32>
    %199 = vector.extract_strided_slice %197 {offsets = [0, 32], sizes = [2, 32], strides = [1, 1]} : vector<2x128xf32> to vector<2x32xf32>
    %200 = vector.extract_strided_slice %197 {offsets = [0, 96], sizes = [2, 32], strides = [1, 1]} : vector<2x128xf32> to vector<2x32xf32>
    %201 = vector.extract_strided_slice %192 {offsets = [0, 64], sizes = [2, 32], strides = [1, 1]} : vector<2x128xf32> to vector<2x32xf32>
    %202 = math.tanh %201 : vector<2x32xf32>
    %203 = arith.mulf %199, %187 : vector<2x32xf32>
    %204 = arith.mulf %198, %202 : vector<2x32xf32>
    %205 = arith.addf %203, %204 : vector<2x32xf32>
    %206 = math.tanh %205 : vector<2x32xf32>
    %207 = arith.mulf %200, %206 : vector<2x32xf32>
    %208 = vector.extract_strided_slice %169 {offsets = [4, 0], sizes = [2, 128], strides = [1, 1]} : vector<16x128xf32> to vector<2x128xf32>
    %cst_39 = arith.constant dense<0.000000e+00> : vector<2x128xf32>
    %209 = tpu.matmul %207, %165, %cst_39 {dimension_numbers = #tpu.dot_dimension_numbers<[1], [0], [0], [1], [0, 0, 1, 1], [], []>} : vector<2x32xf32>, vector<32x128xf32>, vector<2x128xf32> -> vector<2x128xf32>
    %210 = arith.addf %208, %209 : vector<2x128xf32>
    %211 = arith.negf %210 : vector<2x128xf32>
    %212 = math.exp %211 : vector<2x128xf32>
    %cst_40 = arith.constant 1.000000e+00 : f32
    %213 = vector.broadcast %cst_40 : f32 to vector<2x128xf32>
    %214 = arith.addf %213, %212 : vector<2x128xf32>
    %215 = arith.divf %213, %214 : vector<2x128xf32>
    %216 = vector.extract_strided_slice %215 {offsets = [0, 0], sizes = [2, 32], strides = [1, 1]} : vector<2x128xf32> to vector<2x32xf32>
    %217 = vector.extract_strided_slice %215 {offsets = [0, 32], sizes = [2, 32], strides = [1, 1]} : vector<2x128xf32> to vector<2x32xf32>
    %218 = vector.extract_strided_slice %215 {offsets = [0, 96], sizes = [2, 32], strides = [1, 1]} : vector<2x128xf32> to vector<2x32xf32>
    %219 = vector.extract_strided_slice %210 {offsets = [0, 64], sizes = [2, 32], strides = [1, 1]} : vector<2x128xf32> to vector<2x32xf32>
    %220 = math.tanh %219 : vector<2x32xf32>
    %221 = arith.mulf %217, %205 : vector<2x32xf32>
    %222 = arith.mulf %216, %220 : vector<2x32xf32>
    %223 = arith.addf %221, %222 : vector<2x32xf32>
    %224 = math.tanh %223 : vector<2x32xf32>
    %225 = arith.mulf %218, %224 : vector<2x32xf32>
    %226 = vector.extract_strided_slice %169 {offsets = [6, 0], sizes = [2, 128], strides = [1, 1]} : vector<16x128xf32> to vector<2x128xf32>
    %cst_41 = arith.constant dense<0.000000e+00> : vector<2x128xf32>
    %227 = tpu.matmul %225, %165, %cst_41 {dimension_numbers = #tpu.dot_dimension_numbers<[1], [0], [0], [1], [0, 0, 1, 1], [], []>} : vector<2x32xf32>, vector<32x128xf32>, vector<2x128xf32> -> vector<2x128xf32>
    %228 = arith.addf %226, %227 : vector<2x128xf32>
    %229 = arith.negf %228 : vector<2x128xf32>
    %230 = math.exp %229 : vector<2x128xf32>
    %cst_42 = arith.constant 1.000000e+00 : f32
    %231 = vector.broadcast %cst_42 : f32 to vector<2x128xf32>
    %232 = arith.addf %231, %230 : vector<2x128xf32>
    %233 = arith.divf %231, %232 : vector<2x128xf32>
    %234 = vector.extract_strided_slice %233 {offsets = [0, 0], sizes = [2, 32], strides = [1, 1]} : vector<2x128xf32> to vector<2x32xf32>
    %235 = vector.extract_strided_slice %233 {offsets = [0, 32], sizes = [2, 32], strides = [1, 1]} : vector<2x128xf32> to vector<2x32xf32>
    %236 = vector.extract_strided_slice %233 {offsets = [0, 96], sizes = [2, 32], strides = [1, 1]} : vector<2x128xf32> to vector<2x32xf32>
    %237 = vector.extract_strided_slice %228 {offsets = [0, 64], sizes = [2, 32], strides = [1, 1]} : vector<2x128xf32> to vector<2x32xf32>
    %238 = math.tanh %237 : vector<2x32xf32>
    %239 = arith.mulf %235, %223 : vector<2x32xf32>
    %240 = arith.mulf %234, %238 : vector<2x32xf32>
    %241 = arith.addf %239, %240 : vector<2x32xf32>
    %242 = math.tanh %241 : vector<2x32xf32>
    %243 = arith.mulf %236, %242 : vector<2x32xf32>
    %244 = vector.extract_strided_slice %169 {offsets = [8, 0], sizes = [2, 128], strides = [1, 1]} : vector<16x128xf32> to vector<2x128xf32>
    %cst_43 = arith.constant dense<0.000000e+00> : vector<2x128xf32>
    %245 = tpu.matmul %243, %165, %cst_43 {dimension_numbers = #tpu.dot_dimension_numbers<[1], [0], [0], [1], [0, 0, 1, 1], [], []>} : vector<2x32xf32>, vector<32x128xf32>, vector<2x128xf32> -> vector<2x128xf32>
    %246 = arith.addf %244, %245 : vector<2x128xf32>
    %247 = arith.negf %246 : vector<2x128xf32>
    %248 = math.exp %247 : vector<2x128xf32>
    %cst_44 = arith.constant 1.000000e+00 : f32
    %249 = vector.broadcast %cst_44 : f32 to vector<2x128xf32>
    %250 = arith.addf %249, %248 : vector<2x128xf32>
    %251 = arith.divf %249, %250 : vector<2x128xf32>
    %252 = vector.extract_strided_slice %251 {offsets = [0, 0], sizes = [2, 32], strides = [1, 1]} : vector<2x128xf32> to vector<2x32xf32>
    %253 = vector.extract_strided_slice %251 {offsets = [0, 32], sizes = [2, 32], strides = [1, 1]} : vector<2x128xf32> to vector<2x32xf32>
    %254 = vector.extract_strided_slice %251 {offsets = [0, 96], sizes = [2, 32], strides = [1, 1]} : vector<2x128xf32> to vector<2x32xf32>
    %255 = vector.extract_strided_slice %246 {offsets = [0, 64], sizes = [2, 32], strides = [1, 1]} : vector<2x128xf32> to vector<2x32xf32>
    %256 = math.tanh %255 : vector<2x32xf32>
    %257 = arith.mulf %253, %241 : vector<2x32xf32>
    %258 = arith.mulf %252, %256 : vector<2x32xf32>
    %259 = arith.addf %257, %258 : vector<2x32xf32>
    %260 = math.tanh %259 : vector<2x32xf32>
    %261 = arith.mulf %254, %260 : vector<2x32xf32>
    %262 = vector.extract_strided_slice %169 {offsets = [10, 0], sizes = [2, 128], strides = [1, 1]} : vector<16x128xf32> to vector<2x128xf32>
    %cst_45 = arith.constant dense<0.000000e+00> : vector<2x128xf32>
    %263 = tpu.matmul %261, %165, %cst_45 {dimension_numbers = #tpu.dot_dimension_numbers<[1], [0], [0], [1], [0, 0, 1, 1], [], []>} : vector<2x32xf32>, vector<32x128xf32>, vector<2x128xf32> -> vector<2x128xf32>
    %264 = arith.addf %262, %263 : vector<2x128xf32>
    %265 = arith.negf %264 : vector<2x128xf32>
    %266 = math.exp %265 : vector<2x128xf32>
    %cst_46 = arith.constant 1.000000e+00 : f32
    %267 = vector.broadcast %cst_46 : f32 to vector<2x128xf32>
    %268 = arith.addf %267, %266 : vector<2x128xf32>
    %269 = arith.divf %267, %268 : vector<2x128xf32>
    %270 = vector.extract_strided_slice %269 {offsets = [0, 0], sizes = [2, 32], strides = [1, 1]} : vector<2x128xf32> to vector<2x32xf32>
    %271 = vector.extract_strided_slice %269 {offsets = [0, 32], sizes = [2, 32], strides = [1, 1]} : vector<2x128xf32> to vector<2x32xf32>
    %272 = vector.extract_strided_slice %269 {offsets = [0, 96], sizes = [2, 32], strides = [1, 1]} : vector<2x128xf32> to vector<2x32xf32>
    %273 = vector.extract_strided_slice %264 {offsets = [0, 64], sizes = [2, 32], strides = [1, 1]} : vector<2x128xf32> to vector<2x32xf32>
    %274 = math.tanh %273 : vector<2x32xf32>
    %275 = arith.mulf %271, %259 : vector<2x32xf32>
    %276 = arith.mulf %270, %274 : vector<2x32xf32>
    %277 = arith.addf %275, %276 : vector<2x32xf32>
    %278 = math.tanh %277 : vector<2x32xf32>
    %279 = arith.mulf %272, %278 : vector<2x32xf32>
    %280 = vector.extract_strided_slice %169 {offsets = [12, 0], sizes = [2, 128], strides = [1, 1]} : vector<16x128xf32> to vector<2x128xf32>
    %cst_47 = arith.constant dense<0.000000e+00> : vector<2x128xf32>
    %281 = tpu.matmul %279, %165, %cst_47 {dimension_numbers = #tpu.dot_dimension_numbers<[1], [0], [0], [1], [0, 0, 1, 1], [], []>} : vector<2x32xf32>, vector<32x128xf32>, vector<2x128xf32> -> vector<2x128xf32>
    %282 = arith.addf %280, %281 : vector<2x128xf32>
    %283 = arith.negf %282 : vector<2x128xf32>
    %284 = math.exp %283 : vector<2x128xf32>
    %cst_48 = arith.constant 1.000000e+00 : f32
    %285 = vector.broadcast %cst_48 : f32 to vector<2x128xf32>
    %286 = arith.addf %285, %284 : vector<2x128xf32>
    %287 = arith.divf %285, %286 : vector<2x128xf32>
    %288 = vector.extract_strided_slice %287 {offsets = [0, 0], sizes = [2, 32], strides = [1, 1]} : vector<2x128xf32> to vector<2x32xf32>
    %289 = vector.extract_strided_slice %287 {offsets = [0, 32], sizes = [2, 32], strides = [1, 1]} : vector<2x128xf32> to vector<2x32xf32>
    %290 = vector.extract_strided_slice %287 {offsets = [0, 96], sizes = [2, 32], strides = [1, 1]} : vector<2x128xf32> to vector<2x32xf32>
    %291 = vector.extract_strided_slice %282 {offsets = [0, 64], sizes = [2, 32], strides = [1, 1]} : vector<2x128xf32> to vector<2x32xf32>
    %292 = math.tanh %291 : vector<2x32xf32>
    %293 = arith.mulf %289, %277 : vector<2x32xf32>
    %294 = arith.mulf %288, %292 : vector<2x32xf32>
    %295 = arith.addf %293, %294 : vector<2x32xf32>
    %296 = math.tanh %295 : vector<2x32xf32>
    %297 = arith.mulf %290, %296 : vector<2x32xf32>
    %298 = vector.extract_strided_slice %169 {offsets = [14, 0], sizes = [2, 128], strides = [1, 1]} : vector<16x128xf32> to vector<2x128xf32>
    %cst_49 = arith.constant dense<0.000000e+00> : vector<2x128xf32>
    %299 = tpu.matmul %297, %165, %cst_49 {dimension_numbers = #tpu.dot_dimension_numbers<[1], [0], [0], [1], [0, 0, 1, 1], [], []>} : vector<2x32xf32>, vector<32x128xf32>, vector<2x128xf32> -> vector<2x128xf32>
    %300 = arith.addf %298, %299 : vector<2x128xf32>
    %301 = arith.negf %300 : vector<2x128xf32>
    %302 = math.exp %301 : vector<2x128xf32>
    %cst_50 = arith.constant 1.000000e+00 : f32
    %303 = vector.broadcast %cst_50 : f32 to vector<2x128xf32>
    %304 = arith.addf %303, %302 : vector<2x128xf32>
    %305 = arith.divf %303, %304 : vector<2x128xf32>
    %306 = vector.extract_strided_slice %305 {offsets = [0, 0], sizes = [2, 32], strides = [1, 1]} : vector<2x128xf32> to vector<2x32xf32>
    %307 = vector.extract_strided_slice %305 {offsets = [0, 32], sizes = [2, 32], strides = [1, 1]} : vector<2x128xf32> to vector<2x32xf32>
    %308 = vector.extract_strided_slice %305 {offsets = [0, 96], sizes = [2, 32], strides = [1, 1]} : vector<2x128xf32> to vector<2x32xf32>
    %309 = vector.extract_strided_slice %300 {offsets = [0, 64], sizes = [2, 32], strides = [1, 1]} : vector<2x128xf32> to vector<2x32xf32>
    %310 = math.tanh %309 : vector<2x32xf32>
    %311 = arith.mulf %307, %295 : vector<2x32xf32>
    %312 = arith.mulf %306, %310 : vector<2x32xf32>
    %313 = arith.addf %311, %312 : vector<2x32xf32>
    %314 = math.tanh %313 : vector<2x32xf32>
    %315 = arith.mulf %308, %314 : vector<2x32xf32>
    %c0_51 = arith.constant 0 : index
    %c0_52 = arith.constant 0 : index
    %316 = vector.load %arg7[%c0_51, %c0_52] : memref<32x10xf32, #tpu.memory_space<vmem>>, vector<32x10xf32>
    %cst_53 = arith.constant dense<0.000000e+00> : vector<2x10xf32>
    %317 = tpu.matmul %315, %316, %cst_53 {dimension_numbers = #tpu.dot_dimension_numbers<[1], [0], [0], [1], [0, 0, 1, 1], [], []>} : vector<2x32xf32>, vector<32x10xf32>, vector<2x10xf32> -> vector<2x10xf32>
    %c0_54 = arith.constant 0 : index
    %c0_55 = arith.constant 0 : index
    %318 = vector.load %arg8[%c0_54, %c0_55] : memref<1x10xf32, #tpu.memory_space<vmem>>, vector<1x10xf32>
    %319 = vector.broadcast %318 : vector<1x10xf32> to vector<2x10xf32>
    %320 = arith.addf %317, %319 : vector<2x10xf32>
    %c0_56 = arith.constant 0 : index
    %c0_57 = arith.constant 0 : index
    %321 = vector.load %arg9[%c0_56, %c0_57] : memref<2x10xf32, #tpu.memory_space<vmem>>, vector<2x10xf32>
    tpu.vector_store %arg9[%c0_56, %c0_57], %320 {strides = array<i32>} : memref<2x10xf32, #tpu.memory_space<vmem>>, vector<2x10xf32>,
    return
  }
}

</mosaic_0001>

<llo_original>
// kernel: tpu_custom_call.1
$region0: #{tpu_custom_call.1}
  #allocation0 [shape = 'u32[]', space=smem, size = 0x4, offset = 0x4, fixed_abs, tag = 'smem constant byte address 0x4 - core index']
  #allocation1 [shape = 'u32[72,128]{1,0:T(1,128)}', space=vmem, size = 0x9000, scoped, tag = 'internal scratch']
  %s0 = inlined_call_operand.vmem [shape: f32[2,8,16], index: 0, kind: input, shape index: {}]
  %s1 = inlined_call_operand.hbm [shape: f32[16,128], index: 1, kind: input, shape index: {}]
  %s2 = inlined_call_operand.vmem [shape: f32[32,128], index: 2, kind: input, shape index: {}]
  %s3 = inlined_call_operand.vmem [shape: f32[1,128], index: 3, kind: input, shape index: {}]
  %s4 = inlined_call_operand.hbm [shape: f32[32,128], index: 4, kind: input, shape index: {}]
  %s5 = inlined_call_operand.hbm [shape: f32[32,128], index: 5, kind: input, shape index: {}]
  %s6 = inlined_call_operand.vmem [shape: f32[1,128], index: 6, kind: input, shape index: {}]
  %s7 = inlined_call_operand.vmem [shape: f32[32,10], index: 7, kind: input, shape index: {}]
  %s8 = inlined_call_operand.vmem [shape: f32[1,10], index: 8, kind: input, shape index: {}]
  %s9 = inlined_call_operand.hbm [shape: f32[2,10], index: 9, kind: output, shape index: {}]
  %s10 = sld [smem:[#allocation0]]
  $region58: #{tpu_custom_call.1} parent=0
    _
  %s12 = ssub.s32 1, %s10
  %s13 = scalar_select 0, %s12, %s10
  $region1: #{tpu_custom_call.1} parent=0
    #allocation2 [shape = 'u8[8192]{0}', space=vmem, size = 0x2000, scoped, tag = 'input window, operand 1, single buffered']
    #allocation3 [shape = 's32[1]{0}', space=sflag, size = 0x4, scoped, tag = 'scoped memory for tpu_custom_call.1']
    #allocation4 [shape = 's32[1]{0}', space=sflag, size = 0x4, scoped, tag = 'scoped memory for tpu_custom_call.1']
    #allocation5 [shape = 'u8[16384]{0}', space=vmem, size = 0x4000, scoped, tag = 'input window, operand 4, single buffered']
    #allocation6 [shape = 's32[1]{0}', space=sflag, size = 0x4, scoped, tag = 'scoped memory for tpu_custom_call.1']
    #allocation7 [shape = 'u8[16384]{0}', space=vmem, size = 0x4000, scoped, tag = 'input window, operand 5, single buffered']
    #allocation8 [shape = 'u8[1024]{0}', space=vmem, size = 0x400, scoped, tag = 'output window, operand 0, single buffered']
    %14 = vsyncpa [#allocation3], 0
    %15 = vsyncpa [#allocation6], 0
    %16 = vsyncpa [#allocation4], 0
    // Predicated region
    $region2: #{tpu_custom_call.1} parent=1 // pred_check
      _
    $region3: #{tpu_custom_call.1} parent=1 // pred_check_branch
      %18 = sbr.rel (0) target = $region5
    $region4: #{tpu_custom_call.1} parent=1 // pred_region
      _
    $region5: #{tpu_custom_call.1} parent=1 // pred_fallthru
      _
    // Predicated region
    $region6: #{tpu_custom_call.1} parent=1 // pred_check
      _
    $region7: #{tpu_custom_call.1} parent=1 // pred_check_branch
      %20 = sbr.rel (0) target = $region9
    $region8: #{tpu_custom_call.1} parent=1 // pred_region
      %22 = vsyncadd [#allocation3], 0
      %s23 = sshll.u32 %s1, 4
      %s24 = int_to_ptr.hbm [resolvable:$true] %s23
      %s25 = sshll.u32 [#allocation2], 4
      %s26 = int_to_ptr.vmem [resolvable:$true] %s25
      %31 = dma.hbm_to_vmem [thread:$0]  %s24, 256, %s26, [#allocation3], 128, 128, 8
    $region9: #{tpu_custom_call.1} parent=1 // pred_fallthru
      _
    // Predicated region
    $region10: #{tpu_custom_call.1} parent=1 // pred_check
      _
    $region11: #{tpu_custom_call.1} parent=1 // pred_check_branch
      %33 = sbr.rel (0) target = $region13
    $region12: #{tpu_custom_call.1} parent=1 // pred_region
      _
    $region13: #{tpu_custom_call.1} parent=1 // pred_fallthru
      _
    // Predicated region
    $region14: #{tpu_custom_call.1} parent=1 // pred_check
      _
    $region15: #{tpu_custom_call.1} parent=1 // pred_check_branch
      %35 = sbr.rel (0) target = $region17
    $region16: #{tpu_custom_call.1} parent=1 // pred_region
      _
    $region17: #{tpu_custom_call.1} parent=1 // pred_fallthru
      _
    // Predicated region
    $region18: #{tpu_custom_call.1} parent=1 // pred_check
      _
    $region19: #{tpu_custom_call.1} parent=1 // pred_check_branch
      %37 = sbr.rel (0) target = $region21
    $region20: #{tpu_custom_call.1} parent=1 // pred_region
      %39 = vsyncadd [#allocation6], 0
      %s40 = sshll.u32 %s4, 4
      %s41 = int_to_ptr.hbm [resolvable:$true] %s40
      %s42 = sshll.u32 [#allocation5], 4
      %s43 = int_to_ptr.vmem [resolvable:$true] %s42
      %48 = dma.hbm_to_vmem [thread:$0]  %s41, 512, %s43, [#allocation6], 128, 128, 8
    $region21: #{tpu_custom_call.1} parent=1 // pred_fallthru
      _
    // Predicated region
    $region22: #{tpu_custom_call.1} parent=1 // pred_check
      _
    $region23: #{tpu_custom_call.1} parent=1 // pred_check_branch
      %50 = sbr.rel (0) target = $region25
    $region24: #{tpu_custom_call.1} parent=1 // pred_region
      %52 = vsyncadd [#allocation6], 0
      %s53 = sshll.u32 %s5, 4
      %s54 = int_to_ptr.hbm [resolvable:$true] %s53
      %s55 = sshll.u32 [#allocation7], 4
      %s56 = int_to_ptr.vmem [resolvable:$true] %s55
      %61 = dma.hbm_to_vmem [thread:$0]  %s54, 512, %s56, [#allocation6], 128, 128, 8
    $region25: #{tpu_custom_call.1} parent=1 // pred_fallthru
      _
    // Predicated region
    $region26: #{tpu_custom_call.1} parent=1 // pred_check
      _
    $region27: #{tpu_custom_call.1} parent=1 // pred_check_branch
      %63 = sbr.rel (0) target = $region29
    $region28: #{tpu_custom_call.1} parent=1 // pred_region
      _
    $region29: #{tpu_custom_call.1} parent=1 // pred_fallthru
      _
    // Predicated region
    $region30: #{tpu_custom_call.1} parent=1 // pred_check
      _
    $region31: #{tpu_custom_call.1} parent=1 // pred_check_branch
      %65 = sbr.rel (0) target = $region33
    $region32: #{tpu_custom_call.1} parent=1 // pred_region
      _
    $region33: #{tpu_custom_call.1} parent=1 // pred_fallthru
      _
    // Predicated region
    $region34: #{tpu_custom_call.1} parent=1 // pred_check
      _
    $region35: #{tpu_custom_call.1} parent=1 // pred_check_branch
      %67 = sbr.rel (0) target = $region37
    $region36: #{tpu_custom_call.1} parent=1 // pred_region
      _
    $region37: #{tpu_custom_call.1} parent=1 // pred_fallthru
      _
    // Predicated region
    $region38: #{tpu_custom_call.1} parent=1 // pred_check
      _
    $region39: #{tpu_custom_call.1} parent=1 // pred_check_branch
      %69 = sbr.rel (0) target = $region41
    $region40: #{tpu_custom_call.1} parent=1 // pred_region
      %71 = dma.done [#allocation3], 256
    $region41: #{tpu_custom_call.1} parent=1 // pred_fallthru
      _
    // Predicated region
    $region42: #{tpu_custom_call.1} parent=1 // pred_check
      _
    $region43: #{tpu_custom_call.1} parent=1 // pred_check_branch
      %73 = sbr.rel (0) target = $region45
    $region44: #{tpu_custom_call.1} parent=1 // pred_region
      %75 = dma.done [#allocation6], 512
    $region45: #{tpu_custom_call.1} parent=1 // pred_fallthru
      _
    // Predicated region
    $region46: #{tpu_custom_call.1} parent=1 // pred_check
      _
    $region47: #{tpu_custom_call.1} parent=1 // pred_check_branch
      %77 = sbr.rel (0) target = $region49
    $region48: #{tpu_custom_call.1} parent=1 // pred_region
      %79 = dma.done [#allocation6], 512
    $region49: #{tpu_custom_call.1} parent=1 // pred_fallthru
      _
    %v80 = vld [vmem:[#allocation2] sm:$0xff]
    %v81 = vld [vmem:[#allocation2 + $0x8] sm:$0xff]
    %v82 = vld [vmem:[%s2] sm:$0xff]
    %v83 = vld [vmem:[%s2 + $0x8] sm:$0xff]
    %v84 = vld [vmem:[%s2 + $0x10] sm:$0xff]
    %v85 = vld [vmem:[%s2 + $0x18] sm:$0xff]
    %v86 = vld [vmem:[%s3] sm:$0x1]
    %v87 = vld [vmem:[%s0] sm:$0xff]
    %v88 = vld [vmem:[%s0 + $0x8] sm:$0xff]
    %v90 = vperm.slane %v86, 0
    %vm92 = vcmask 130048
    %v94 = vsel %vm92, %v87, 0
    %v97 = vsel %vm92, %v88, 0
    %99 = vmatpush.msra.mxu0 0.0
    %100 = vmatpush.msra.mxu0 0.0
    %101 = vmatpush.msra.mxu0 0.0
    %102 = vmatpush.msra.mxu0 0.0
    %103 = vmatpush.msra.mxu0 0.0
    %104 = vmatpush.msra.mxu0 0.0
    %105 = vmatpush.msra.mxu0 0.0
    %106 = vmatpush.msra.mxu0 0.0
    %107 = vmatpush.msra.mxu0 0.0
    %108 = vmatpush.msra.mxu0 0.0
    %109 = vmatpush.msra.mxu0 0.0
    %110 = vmatpush.msra.mxu0 0.0
    %111 = vmatpush.msra.mxu0 0.0
    %112 = vmatpush.msra.mxu0 0.0
    %113 = vmatpush.msra.mxu0 %v81
    %114 = vmatpush.msra.mxu0 %v80
    %115 = vmatmul.f32.gmra.mxu0 %v94
    %v116 = vpop.f32.mrf.mxu0
    %v117 = vadd.f32 %v90, %v116
    %118 = vmatmul.f32.gmra.mxu0 %v97
    %v119 = vpop.f32.mrf.mxu0
    %v120 = vadd.f32 %v90, %v119
    %121 = vdwg.mxu0
    %vm122 = vcmask 261120
    %v124 = vsel %vm122, 0.0, 0
    %126 = vmatpush.msra.mxu0 0.0
    %127 = vmatpush.msra.mxu0 0.0
    %128 = vmatpush.msra.mxu0 0.0
    %129 = vmatpush.msra.mxu0 0.0
    %130 = vmatpush.msra.mxu0 0.0
    %131 = vmatpush.msra.mxu0 0.0
    %132 = vmatpush.msra.mxu0 0.0
    %133 = vmatpush.msra.mxu0 0.0
    %134 = vmatpush.msra.mxu0 0.0
    %135 = vmatpush.msra.mxu0 0.0
    %136 = vmatpush.msra.mxu0 0.0
    %137 = vmatpush.msra.mxu0 0.0
    %138 = vmatpush.msra.mxu0 %v85
    %139 = vmatpush.msra.mxu0 %v84
    %140 = vmatpush.msra.mxu0 %v83
    %141 = vmatpush.msra.mxu0 %v82
    %142 = vmatmul.f32.gmra.mxu0 %v124
    %v143 = vpop.f32.mrf.mxu0
    %v144 = vadd.f32 0.0, %v143
    %145 = vdwg.mxu0
    %v147 = vrot.slane %v144, 1
    %v150 = vadd.f32 %v117, %v144
    %v151 = vadd.f32 %v120, %v147
    %v152 = vxor.u32 %v150, 2147483648
    %v153 = vxor.u32 %v151, 2147483648
    %v154 = vmul.f32 %v152, 1.442695
    %v155 = vpow.pop %v154
    %v156 = vmul.f32 %v153, 1.442695
    %v157 = vpow.pop %v156
    %v158 = vadd.f32 %v155, 1.0
    %v159 = vadd.f32 %v157, 1.0
    %v160 = vrcp.pop %v158
    %v161 = vmul.f32 %v158, %v160
    %v162 = vsub.f32 1.0, %v161
    %v163 = vmul.f32 %v160, %v162
    %v164 = vadd.f32 %v160, %v163
    %vm165 = vweird.f32 %v158
    %vm166 = vweird.f32 %v160
    %vm167 = vmor %vm165, %vm166
    %v168 = vsel %vm167, %v160, %v164
    %v169 = vand.u32 2147483647, %v158
    %vm170 = vcmp.eq.f32.partialorder %v169, 8.507059e+37
    %v171 = vand.u32 %v158, 2147483648
    %v172 = vor.u32 1.1754944e-38, %v171
    %v173 = vsel %vm170, %v172, %v168
    %v174 = vmul.f32 1.0, %v173
    %v175 = vrcp.pop %v159
    %v176 = vmul.f32 %v159, %v175
    %v177 = vsub.f32 1.0, %v176
    %v178 = vmul.f32 %v175, %v177
    %v179 = vadd.f32 %v175, %v178
    %vm180 = vweird.f32 %v159
    %vm181 = vweird.f32 %v175
    %vm182 = vmor %vm180, %vm181
    %v183 = vsel %vm182, %v175, %v179
    %v184 = vand.u32 2147483647, %v159
    %vm185 = vcmp.eq.f32.partialorder %v184, 8.507059e+37
    %v186 = vand.u32 %v159, 2147483648
    %v187 = vor.u32 1.1754944e-38, %v186
    %v188 = vsel %vm185, %v187, %v183
    %v189 = vmul.f32 1.0, %v188
    %v190 = vtanh.pop %v150
    %v191 = vtanh.pop %v151
    %v192 = vmul.f32 %v174, 0.0
    %v193 = vmul.f32 %v189, 0.0
    %196 = vrot.lane.b32.xlu0 %v190, 64
    %v197 = vpop.permute.xlu0 %196
    %198 = vrot.lane.b32.xlu0 %v191, 64
    %v199 = vpop.permute.xlu0 %198
    %v202 = vmul.f32 %v174, %v197
    %v203 = vmul.f32 %v189, %v199
    %206 = vrot.lane.b32.xlu0 %v202, 32
    %v207 = vpop.permute.xlu0 %206
    %208 = vrot.lane.b32.xlu0 %v203, 32
    %v209 = vpop.permute.xlu0 %208
    %v212 = vadd.f32 %v192, %v207
    %v213 = vadd.f32 %v193, %v209
    %v214 = vtanh.pop %v212
    %v215 = vtanh.pop %v213
    %218 = vrot.lane.b32.xlu0 %v214, 64
    %v219 = vpop.permute.xlu0 %218
    %220 = vrot.lane.b32.xlu0 %v215, 64
    %v221 = vpop.permute.xlu0 %220
    %v224 = vmul.f32 %v174, %v219
    %v225 = vmul.f32 %v189, %v221
    %v228 = vrot.slane %v225, 7
    %vm229 = vcmask 1041409
    %v230 = vsel %vm229, %v228, %v224
    %231 = vrot.lane.b32.xlu0 %v230, 32
    %v232 = vpop.permute.xlu0 %231
    %v233 = vsel %vm122, %v232, 0
    %235 = vmatpush.msra.mxu0 0.0
    %236 = vmatpush.msra.mxu0 0.0
    %237 = vmatpush.msra.mxu0 0.0
    %238 = vmatpush.msra.mxu0 0.0
    %239 = vmatpush.msra.mxu0 0.0
    %240 = vmatpush.msra.mxu0 0.0
    %241 = vmatpush.msra.mxu0 0.0
    %242 = vmatpush.msra.mxu0 0.0
    %243 = vmatpush.msra.mxu0 0.0
    %244 = vmatpush.msra.mxu0 0.0
    %245 = vmatpush.msra.mxu0 0.0
    %246 = vmatpush.msra.mxu0 0.0
    %247 = vmatpush.msra.mxu0 %v85
    %248 = vmatpush.msra.mxu0 %v84
    %249 = vmatpush.msra.mxu0 %v83
    %250 = vmatpush.msra.mxu0 %v82
    %251 = vmatmul.f32.gmra.mxu0 %v233
    %v252 = vpop.f32.mrf.mxu0
    %v253 = vadd.f32 0.0, %v252
    %254 = vdwg.mxu0
    %v256 = vrot.slane %v253, 7
    %v259 = vadd.f32 %v117, %v256
    %v260 = vadd.f32 %v120, %v253
    %v261 = vxor.u32 %v259, 2147483648
    %v262 = vxor.u32 %v260, 2147483648
    %v263 = vmul.f32 %v261, 1.442695
    %v264 = vpow.pop %v263
    %v265 = vmul.f32 %v262, 1.442695
    %v266 = vpow.pop %v265
    %v267 = vadd.f32 %v264, 1.0
    %v268 = vadd.f32 %v266, 1.0
    %v269 = vrcp.pop %v267
    %v270 = vmul.f32 %v267, %v269
    %v271 = vsub.f32 1.0, %v270
    %v272 = vmul.f32 %v269, %v271
    %v273 = vadd.f32 %v269, %v272
    %vm274 = vweird.f32 %v267
    %vm275 = vweird.f32 %v269
    %vm276 = vmor %vm274, %vm275
    %v277 = vsel %vm276, %v269, %v273
    %v278 = vand.u32 2147483647, %v267
    %vm279 = vcmp.eq.f32.partialorder %v278, 8.507059e+37
    %v280 = vand.u32 %v267, 2147483648
    %v281 = vor.u32 1.1754944e-38, %v280
    %v282 = vsel %vm279, %v281, %v277
    %v283 = vmul.f32 1.0, %v282
    %v284 = vrcp.pop %v268
    %v285 = vmul.f32 %v268, %v284
    %v286 = vsub.f32 1.0, %v285
    %v287 = vmul.f32 %v284, %v286
    %v288 = vadd.f32 %v284, %v287
    %vm289 = vweird.f32 %v268
    %vm290 = vweird.f32 %v284
    %vm291 = vmor %vm289, %vm290
    %v292 = vsel %vm291, %v284, %v288
    %v293 = vand.u32 2147483647, %v268
    %vm294 = vcmp.eq.f32.partialorder %v293, 8.507059e+37
    %v295 = vand.u32 %v268, 2147483648
    %v296 = vor.u32 1.1754944e-38, %v295
    %v297 = vsel %vm294, %v296, %v292
    %v298 = vmul.f32 1.0, %v297
    %v299 = vtanh.pop %v259
    %v300 = vtanh.pop %v260
    %v303 = vrot.slane %v212, 7
    %v304 = vrot.slane %v213, 7
    %v307 = vmul.f32 %v283, %v303
    %v308 = vmul.f32 %v298, %v304
    %311 = vrot.lane.b32.xlu0 %v299, 64
    %v312 = vpop.permute.xlu0 %311
    %313 = vrot.lane.b32.xlu0 %v300, 64
    %v314 = vpop.permute.xlu0 %313
    %v317 = vmul.f32 %v283, %v312
    %v318 = vmul.f32 %v298, %v314
    %321 = vrot.lane.b32.xlu0 %v317, 32
    %v322 = vpop.permute.xlu0 %321
    %323 = vrot.lane.b32.xlu0 %v318, 32
    %v324 = vpop.permute.xlu0 %323
    %v327 = vadd.f32 %v307, %v322
    %v328 = vadd.f32 %v308, %v324
    %v329 = vtanh.pop %v327
    %v330 = vtanh.pop %v328
    %333 = vrot.lane.b32.xlu0 %v329, 64
    %v334 = vpop.permute.xlu0 %333
    %335 = vrot.lane.b32.xlu0 %v330, 64
    %v336 = vpop.permute.xlu0 %335
    %v339 = vmul.f32 %v283, %v334
    %v340 = vmul.f32 %v298, %v336
    %v343 = vrot.slane %v339, 1
    %v344 = vsel %vm229, %v340, %v343
    %345 = vrot.lane.b32.xlu0 %v344, 32
    %v346 = vpop.permute.xlu0 %345
    %v347 = vsel %vm122, %v346, 0
    %349 = vmatpush.msra.mxu0 0.0
    %350 = vmatpush.msra.mxu0 0.0
    %351 = vmatpush.msra.mxu0 0.0
    %352 = vmatpush.msra.mxu0 0.0
    %353 = vmatpush.msra.mxu0 0.0
    %354 = vmatpush.msra.mxu0 0.0
    %355 = vmatpush.msra.mxu0 0.0
    %356 = vmatpush.msra.mxu0 0.0
    %357 = vmatpush.msra.mxu0 0.0
    %358 = vmatpush.msra.mxu0 0.0
    %359 = vmatpush.msra.mxu0 0.0
    %360 = vmatpush.msra.mxu0 0.0
    %361 = vmatpush.msra.mxu0 %v85
    %362 = vmatpush.msra.mxu0 %v84
    %363 = vmatpush.msra.mxu0 %v83
    %364 = vmatpush.msra.mxu0 %v82
    %365 = vmatmul.f32.gmra.mxu0 %v347
    %v366 = vpop.f32.mrf.mxu0
    %v367 = vadd.f32 0.0, %v366
    %368 = vdwg.mxu0
    %v370 = vrot.slane %v367, 6
    %v371 = vrot.slane %v367, 7
    %v374 = vadd.f32 %v117, %v370
    %v375 = vadd.f32 %v120, %v371
    %v376 = vxor.u32 %v374, 2147483648
    %v377 = vxor.u32 %v375, 2147483648
    %v378 = vmul.f32 %v376, 1.442695
    %v379 = vpow.pop %v378
    %v380 = vmul.f32 %v377, 1.442695
    %v381 = vpow.pop %v380
    %v382 = vadd.f32 %v379, 1.0
    %v383 = vadd.f32 %v381, 1.0
    %v384 = vrcp.pop %v382
    %v385 = vmul.f32 %v382, %v384
    %v386 = vsub.f32 1.0, %v385
    %v387 = vmul.f32 %v384, %v386
    %v388 = vadd.f32 %v384, %v387
    %vm389 = vweird.f32 %v382
    %vm390 = vweird.f32 %v384
    %vm391 = vmor %vm389, %vm390
    %v392 = vsel %vm391, %v384, %v388
    %v393 = vand.u32 2147483647, %v382
    %vm394 = vcmp.eq.f32.partialorder %v393, 8.507059e+37
    %v395 = vand.u32 %v382, 2147483648
    %v396 = vor.u32 1.1754944e-38, %v395
    %v397 = vsel %vm394, %v396, %v392
    %v398 = vmul.f32 1.0, %v397
    %v399 = vrcp.pop %v383
    %v400 = vmul.f32 %v383, %v399
    %v401 = vsub.f32 1.0, %v400
    %v402 = vmul.f32 %v399, %v401
    %v403 = vadd.f32 %v399, %v402
    %vm404 = vweird.f32 %v383
    %vm405 = vweird.f32 %v399
    %vm406 = vmor %vm404, %vm405
    %v407 = vsel %vm406, %v399, %v403
    %v408 = vand.u32 2147483647, %v383
    %vm409 = vcmp.eq.f32.partialorder %v408, 8.507059e+37
    %v410 = vand.u32 %v383, 2147483648
    %v411 = vor.u32 1.1754944e-38, %v410
    %v412 = vsel %vm409, %v411, %v407
    %v413 = vmul.f32 1.0, %v412
    %v414 = vtanh.pop %v374
    %v415 = vtanh.pop %v375
    %v418 = vrot.slane %v327, 7
    %v419 = vrot.slane %v328, 7
    %v422 = vmul.f32 %v398, %v418
    %v423 = vmul.f32 %v413, %v419
    %426 = vrot.lane.b32.xlu0 %v414, 64
    %v427 = vpop.permute.xlu0 %426
    %428 = vrot.lane.b32.xlu0 %v415, 64
    %v429 = vpop.permute.xlu0 %428
    %v432 = vmul.f32 %v398, %v427
    %v433 = vmul.f32 %v413, %v429
    %436 = vrot.lane.b32.xlu0 %v432, 32
    %v437 = vpop.permute.xlu0 %436
    %438 = vrot.lane.b32.xlu0 %v433, 32
    %v439 = vpop.permute.xlu0 %438
    %v442 = vadd.f32 %v422, %v437
    %v443 = vadd.f32 %v423, %v439
    %v444 = vtanh.pop %v442
    %v445 = vtanh.pop %v443
    %448 = vrot.lane.b32.xlu0 %v444, 64
    %v449 = vpop.permute.xlu0 %448
    %450 = vrot.lane.b32.xlu0 %v445, 64
    %v451 = vpop.permute.xlu0 %450
    %v454 = vmul.f32 %v398, %v449
    %v455 = vmul.f32 %v413, %v451
    %v458 = vrot.slane %v454, 2
    %v459 = vrot.slane %v455, 1
    %v460 = vsel %vm229, %v459, %v458
    %461 = vrot.lane.b32.xlu0 %v460, 32
    %v462 = vpop.permute.xlu0 %461
    %v463 = vsel %vm122, %v462, 0
    %465 = vmatpush.msra.mxu0 0.0
    %466 = vmatpush.msra.mxu0 0.0
    %467 = vmatpush.msra.mxu0 0.0
    %468 = vmatpush.msra.mxu0 0.0
    %469 = vmatpush.msra.mxu0 0.0
    %470 = vmatpush.msra.mxu0 0.0
    %471 = vmatpush.msra.mxu0 0.0
    %472 = vmatpush.msra.mxu0 0.0
    %473 = vmatpush.msra.mxu0 0.0
    %474 = vmatpush.msra.mxu0 0.0
    %475 = vmatpush.msra.mxu0 0.0
    %476 = vmatpush.msra.mxu0 0.0
    %477 = vmatpush.msra.mxu0 %v85
    %478 = vmatpush.msra.mxu0 %v84
    %479 = vmatpush.msra.mxu0 %v83
    %480 = vmatpush.msra.mxu0 %v82
    %481 = vmatmul.f32.gmra.mxu0 %v463
    %v482 = vpop.f32.mrf.mxu0
    %v483 = vadd.f32 0.0, %v482
    %484 = vdwg.mxu0
    %v486 = vrot.slane %v483, 5
    %v487 = vrot.slane %v483, 6
    %v490 = vadd.f32 %v117, %v486
    %v491 = vadd.f32 %v120, %v487
    %v492 = vxor.u32 %v490, 2147483648
    %v493 = vxor.u32 %v491, 2147483648
    %v494 = vmul.f32 %v492, 1.442695
    %v495 = vpow.pop %v494
    %v496 = vmul.f32 %v493, 1.442695
    %v497 = vpow.pop %v496
    %v498 = vadd.f32 %v495, 1.0
    %v499 = vadd.f32 %v497, 1.0
    %v500 = vrcp.pop %v498
    %v501 = vmul.f32 %v498, %v500
    %v502 = vsub.f32 1.0, %v501
    %v503 = vmul.f32 %v500, %v502
    %v504 = vadd.f32 %v500, %v503
    %vm505 = vweird.f32 %v498
    %vm506 = vweird.f32 %v500
    %vm507 = vmor %vm505, %vm506
    %v508 = vsel %vm507, %v500, %v504
    %v509 = vand.u32 2147483647, %v498
    %vm510 = vcmp.eq.f32.partialorder %v509, 8.507059e+37
    %v511 = vand.u32 %v498, 2147483648
    %v512 = vor.u32 1.1754944e-38, %v511
    %v513 = vsel %vm510, %v512, %v508
    %v514 = vmul.f32 1.0, %v513
    %v515 = vrcp.pop %v499
    %v516 = vmul.f32 %v499, %v515
    %v517 = vsub.f32 1.0, %v516
    %v518 = vmul.f32 %v515, %v517
    %v519 = vadd.f32 %v515, %v518
    %vm520 = vweird.f32 %v499
    %vm521 = vweird.f32 %v515
    %vm522 = vmor %vm520, %vm521
    %v523 = vsel %vm522, %v515, %v519
    %v524 = vand.u32 2147483647, %v499
    %vm525 = vcmp.eq.f32.partialorder %v524, 8.507059e+37
    %v526 = vand.u32 %v499, 2147483648
    %v527 = vor.u32 1.1754944e-38, %v526
    %v528 = vsel %vm525, %v527, %v523
    %v529 = vmul.f32 1.0, %v528
    %v530 = vtanh.pop %v490
    %v531 = vtanh.pop %v491
    %v534 = vrot.slane %v442, 7
    %v535 = vrot.slane %v443, 7
    %v538 = vmul.f32 %v514, %v534
    %v539 = vmul.f32 %v529, %v535
    %542 = vrot.lane.b32.xlu0 %v530, 64
    %v543 = vpop.permute.xlu0 %542
    %544 = vrot.lane.b32.xlu0 %v531, 64
    %v545 = vpop.permute.xlu0 %544
    %v548 = vmul.f32 %v514, %v543
    %v549 = vmul.f32 %v529, %v545
    %552 = vrot.lane.b32.xlu0 %v548, 32
    %v553 = vpop.permute.xlu0 %552
    %554 = vrot.lane.b32.xlu0 %v549, 32
    %v555 = vpop.permute.xlu0 %554
    %v558 = vadd.f32 %v538, %v553
    %v559 = vadd.f32 %v539, %v555
    %v560 = vtanh.pop %v558
    %v561 = vtanh.pop %v559
    %564 = vrot.lane.b32.xlu0 %v560, 64
    %v565 = vpop.permute.xlu0 %564
    %566 = vrot.lane.b32.xlu0 %v561, 64
    %v567 = vpop.permute.xlu0 %566
    %v570 = vmul.f32 %v514, %v565
    %v571 = vmul.f32 %v529, %v567
    %v574 = vrot.slane %v570, 3
    %v575 = vrot.slane %v571, 2
    %v576 = vsel %vm229, %v575, %v574
    %577 = vrot.lane.b32.xlu0 %v576, 32
    %v578 = vpop.permute.xlu0 %577
    %v579 = vsel %vm122, %v578, 0
    %581 = vmatpush.msra.mxu0 0.0
    %582 = vmatpush.msra.mxu0 0.0
    %583 = vmatpush.msra.mxu0 0.0
    %584 = vmatpush.msra.mxu0 0.0
    %585 = vmatpush.msra.mxu0 0.0
    %586 = vmatpush.msra.mxu0 0.0
    %587 = vmatpush.msra.mxu0 0.0
    %588 = vmatpush.msra.mxu0 0.0
    %589 = vmatpush.msra.mxu0 0.0
    %590 = vmatpush.msra.mxu0 0.0
    %591 = vmatpush.msra.mxu0 0.0
    %592 = vmatpush.msra.mxu0 0.0
    %593 = vmatpush.msra.mxu0 %v85
    %594 = vmatpush.msra.mxu0 %v84
    %595 = vmatpush.msra.mxu0 %v83
    %596 = vmatpush.msra.mxu0 %v82
    %597 = vmatmul.f32.gmra.mxu0 %v579
    %v598 = vpop.f32.mrf.mxu0
    %v599 = vadd.f32 0.0, %v598
    %600 = vdwg.mxu0
    %v602 = vrot.slane %v599, 4
    %v603 = vrot.slane %v599, 5
    %v606 = vadd.f32 %v117, %v602
    %v607 = vadd.f32 %v120, %v603
    %v608 = vxor.u32 %v606, 2147483648
    %v609 = vxor.u32 %v607, 2147483648
    %v610 = vmul.f32 %v608, 1.442695
    %v611 = vpow.pop %v610
    %v612 = vmul.f32 %v609, 1.442695
    %v613 = vpow.pop %v612
    %v614 = vadd.f32 %v611, 1.0
    %v615 = vadd.f32 %v613, 1.0
    %v616 = vrcp.pop %v614
    %v617 = vmul.f32 %v614, %v616
    %v618 = vsub.f32 1.0, %v617
    %v619 = vmul.f32 %v616, %v618
    %v620 = vadd.f32 %v616, %v619
    %vm621 = vweird.f32 %v614
    %vm622 = vweird.f32 %v616
    %vm623 = vmor %vm621, %vm622
    %v624 = vsel %vm623, %v616, %v620
    %v625 = vand.u32 2147483647, %v614
    %vm626 = vcmp.eq.f32.partialorder %v625, 8.507059e+37
    %v627 = vand.u32 %v614, 2147483648
    %v628 = vor.u32 1.1754944e-38, %v627
    %v629 = vsel %vm626, %v628, %v624
    %v630 = vmul.f32 1.0, %v629
    %v631 = vrcp.pop %v615
    %v632 = vmul.f32 %v615, %v631
    %v633 = vsub.f32 1.0, %v632
    %v634 = vmul.f32 %v631, %v633
    %v635 = vadd.f32 %v631, %v634
    %vm636 = vweird.f32 %v615
    %vm637 = vweird.f32 %v631
    %vm638 = vmor %vm636, %vm637
    %v639 = vsel %vm638, %v631, %v635
    %v640 = vand.u32 2147483647, %v615
    %vm641 = vcmp.eq.f32.partialorder %v640, 8.507059e+37
    %v642 = vand.u32 %v615, 2147483648
    %v643 = vor.u32 1.1754944e-38, %v642
    %v644 = vsel %vm641, %v643, %v639
    %v645 = vmul.f32 1.0, %v644
    %v646 = vtanh.pop %v606
    %v647 = vtanh.pop %v607
    %v650 = vrot.slane %v558, 7
    %v651 = vrot.slane %v559, 7
    %v654 = vmul.f32 %v630, %v650
    %v655 = vmul.f32 %v645, %v651
    %658 = vrot.lane.b32.xlu0 %v646, 64
    %v659 = vpop.permute.xlu0 %658
    %660 = vrot.lane.b32.xlu0 %v647, 64
    %v661 = vpop.permute.xlu0 %660
    %v664 = vmul.f32 %v630, %v659
    %v665 = vmul.f32 %v645, %v661
    %668 = vrot.lane.b32.xlu0 %v664, 32
    %v669 = vpop.permute.xlu0 %668
    %670 = vrot.lane.b32.xlu0 %v665, 32
    %v671 = vpop.permute.xlu0 %670
    %v674 = vadd.f32 %v654, %v669
    %v675 = vadd.f32 %v655, %v671
    %v676 = vtanh.pop %v674
    %v677 = vtanh.pop %v675
    %680 = vrot.lane.b32.xlu0 %v676, 64
    %v681 = vpop.permute.xlu0 %680
    %682 = vrot.lane.b32.xlu0 %v677, 64
    %v683 = vpop.permute.xlu0 %682
    %v686 = vmul.f32 %v630, %v681
    %v687 = vmul.f32 %v645, %v683
    %v690 = vrot.slane %v686, 4
    %v691 = vrot.slane %v687, 3
    %v692 = vsel %vm229, %v691, %v690
    %693 = vrot.lane.b32.xlu0 %v692, 32
    %v694 = vpop.permute.xlu0 %693
    %v695 = vsel %vm122, %v694, 0
    %697 = vmatpush.msra.mxu0 0.0
    %698 = vmatpush.msra.mxu0 0.0
    %699 = vmatpush.msra.mxu0 0.0
    %700 = vmatpush.msra.mxu0 0.0
    %701 = vmatpush.msra.mxu0 0.0
    %702 = vmatpush.msra.mxu0 0.0
    %703 = vmatpush.msra.mxu0 0.0
    %704 = vmatpush.msra.mxu0 0.0
    %705 = vmatpush.msra.mxu0 0.0
    %706 = vmatpush.msra.mxu0 0.0
    %707 = vmatpush.msra.mxu0 0.0
    %708 = vmatpush.msra.mxu0 0.0
    %709 = vmatpush.msra.mxu0 %v85
    %710 = vmatpush.msra.mxu0 %v84
    %711 = vmatpush.msra.mxu0 %v83
    %712 = vmatpush.msra.mxu0 %v82
    %713 = vmatmul.f32.gmra.mxu0 %v695
    %v714 = vpop.f32.mrf.mxu0
    %v715 = vadd.f32 0.0, %v714
    %716 = vdwg.mxu0
    %v718 = vrot.slane %v715, 3
    %v719 = vrot.slane %v715, 4
    %v722 = vadd.f32 %v117, %v718
    %v723 = vadd.f32 %v120, %v719
    %v724 = vxor.u32 %v722, 2147483648
    %v725 = vxor.u32 %v723, 2147483648
    %v726 = vmul.f32 %v724, 1.442695
    %v727 = vpow.pop %v726
    %v728 = vmul.f32 %v725, 1.442695
    %v729 = vpow.pop %v728
    %v730 = vadd.f32 %v727, 1.0
    %v731 = vadd.f32 %v729, 1.0
    %v732 = vrcp.pop %v730
    %v733 = vmul.f32 %v730, %v732
    %v734 = vsub.f32 1.0, %v733
    %v735 = vmul.f32 %v732, %v734
    %v736 = vadd.f32 %v732, %v735
    %vm737 = vweird.f32 %v730
    %vm738 = vweird.f32 %v732
    %vm739 = vmor %vm737, %vm738
    %v740 = vsel %vm739, %v732, %v736
    %v741 = vand.u32 2147483647, %v730
    %vm742 = vcmp.eq.f32.partialorder %v741, 8.507059e+37
    %v743 = vand.u32 %v730, 2147483648
    %v744 = vor.u32 1.1754944e-38, %v743
    %v745 = vsel %vm742, %v744, %v740
    %v746 = vmul.f32 1.0, %v745
    %v747 = vrcp.pop %v731
    %v748 = vmul.f32 %v731, %v747
    %v749 = vsub.f32 1.0, %v748
    %v750 = vmul.f32 %v747, %v749
    %v751 = vadd.f32 %v747, %v750
    %vm752 = vweird.f32 %v731
    %vm753 = vweird.f32 %v747
    %vm754 = vmor %vm752, %vm753
    %v755 = vsel %vm754, %v747, %v751
    %v756 = vand.u32 2147483647, %v731
    %vm757 = vcmp.eq.f32.partialorder %v756, 8.507059e+37
    %v758 = vand.u32 %v731, 2147483648
    %v759 = vor.u32 1.1754944e-38, %v758
    %v760 = vsel %vm757, %v759, %v755
    %v761 = vmul.f32 1.0, %v760
    %v762 = vtanh.pop %v722
    %v763 = vtanh.pop %v723
    %v766 = vrot.slane %v674, 7
    %v767 = vrot.slane %v675, 7
    %v770 = vmul.f32 %v746, %v766
    %v771 = vmul.f32 %v761, %v767
    %774 = vrot.lane.b32.xlu0 %v762, 64
    %v775 = vpop.permute.xlu0 %774
    %776 = vrot.lane.b32.xlu0 %v763, 64
    %v777 = vpop.permute.xlu0 %776
    %v780 = vmul.f32 %v746, %v775
    %v781 = vmul.f32 %v761, %v777
    %784 = vrot.lane.b32.xlu0 %v780, 32
    %v785 = vpop.permute.xlu0 %784
    %786 = vrot.lane.b32.xlu0 %v781, 32
    %v787 = vpop.permute.xlu0 %786
    %v790 = vadd.f32 %v770, %v785
    %v791 = vadd.f32 %v771, %v787
    %v792 = vtanh.pop %v790
    %v793 = vtanh.pop %v791
    %796 = vrot.lane.b32.xlu0 %v792, 64
    %v797 = vpop.permute.xlu0 %796
    %798 = vrot.lane.b32.xlu0 %v793, 64
    %v799 = vpop.permute.xlu0 %798
    %v802 = vmul.f32 %v746, %v797
    %v803 = vmul.f32 %v761, %v799
    %v806 = vrot.slane %v802, 5
    %v807 = vrot.slane %v803, 4
    %v808 = vsel %vm229, %v807, %v806
    %809 = vrot.lane.b32.xlu0 %v808, 32
    %v810 = vpop.permute.xlu0 %809
    %v811 = vsel %vm122, %v810, 0
    %813 = vmatpush.msra.mxu0 0.0
    %814 = vmatpush.msra.mxu0 0.0
    %815 = vmatpush.msra.mxu0 0.0
    %816 = vmatpush.msra.mxu0 0.0
    %817 = vmatpush.msra.mxu0 0.0
    %818 = vmatpush.msra.mxu0 0.0
    %819 = vmatpush.msra.mxu0 0.0
    %820 = vmatpush.msra.mxu0 0.0
    %821 = vmatpush.msra.mxu0 0.0
    %822 = vmatpush.msra.mxu0 0.0
    %823 = vmatpush.msra.mxu0 0.0
    %824 = vmatpush.msra.mxu0 0.0
    %825 = vmatpush.msra.mxu0 %v85
    %826 = vmatpush.msra.mxu0 %v84
    %827 = vmatpush.msra.mxu0 %v83
    %828 = vmatpush.msra.mxu0 %v82
    %829 = vmatmul.f32.gmra.mxu0 %v811
    %v830 = vpop.f32.mrf.mxu0
    %v831 = vadd.f32 0.0, %v830
    %832 = vdwg.mxu0
    %v834 = vrot.slane %v831, 2
    %v835 = vrot.slane %v831, 3
    %v838 = vadd.f32 %v117, %v834
    %v839 = vadd.f32 %v120, %v835
    %v840 = vxor.u32 %v838, 2147483648
    %v841 = vxor.u32 %v839, 2147483648
    %v842 = vmul.f32 %v840, 1.442695
    %v843 = vpow.pop %v842
    %v844 = vmul.f32 %v841, 1.442695
    %v845 = vpow.pop %v844
    %v846 = vadd.f32 %v843, 1.0
    %v847 = vadd.f32 %v845, 1.0
    %v848 = vrcp.pop %v846
    %v849 = vmul.f32 %v846, %v848
    %v850 = vsub.f32 1.0, %v849
    %v851 = vmul.f32 %v848, %v850
    %v852 = vadd.f32 %v848, %v851
    %vm853 = vweird.f32 %v846
    %vm854 = vweird.f32 %v848
    %vm855 = vmor %vm853, %vm854
    %v856 = vsel %vm855, %v848, %v852
    %v857 = vand.u32 2147483647, %v846
    %vm858 = vcmp.eq.f32.partialorder %v857, 8.507059e+37
    %v859 = vand.u32 %v846, 2147483648
    %v860 = vor.u32 1.1754944e-38, %v859
    %v861 = vsel %vm858, %v860, %v856
    %v862 = vmul.f32 1.0, %v861
    %v863 = vrcp.pop %v847
    %v864 = vmul.f32 %v847, %v863
    %v865 = vsub.f32 1.0, %v864
    %v866 = vmul.f32 %v863, %v865
    %v867 = vadd.f32 %v863, %v866
    %vm868 = vweird.f32 %v847
    %vm869 = vweird.f32 %v863
    %vm870 = vmor %vm868, %vm869
    %v871 = vsel %vm870, %v863, %v867
    %v872 = vand.u32 2147483647, %v847
    %vm873 = vcmp.eq.f32.partialorder %v872, 8.507059e+37
    %v874 = vand.u32 %v847, 2147483648
    %v875 = vor.u32 1.1754944e-38, %v874
    %v876 = vsel %vm873, %v875, %v871
    %v877 = vmul.f32 1.0, %v876
    %v878 = vtanh.pop %v838
    %v879 = vtanh.pop %v839
    %v882 = vrot.slane %v790, 7
    %v883 = vrot.slane %v791, 7
    %v886 = vmul.f32 %v862, %v882
    %v887 = vmul.f32 %v877, %v883
    %890 = vrot.lane.b32.xlu0 %v878, 64
    %v891 = vpop.permute.xlu0 %890
    %892 = vrot.lane.b32.xlu0 %v879, 64
    %v893 = vpop.permute.xlu0 %892
    %v896 = vmul.f32 %v862, %v891
    %v897 = vmul.f32 %v877, %v893
    %900 = vrot.lane.b32.xlu0 %v896, 32
    %v901 = vpop.permute.xlu0 %900
    %902 = vrot.lane.b32.xlu0 %v897, 32
    %v903 = vpop.permute.xlu0 %902
    %v906 = vadd.f32 %v886, %v901
    %v907 = vadd.f32 %v887, %v903
    %v908 = vtanh.pop %v906
    %v909 = vtanh.pop %v907
    %912 = vrot.lane.b32.xlu0 %v908, 64
    %v913 = vpop.permute.xlu0 %912
    %914 = vrot.lane.b32.xlu0 %v909, 64
    %v915 = vpop.permute.xlu0 %914
    %v918 = vmul.f32 %v862, %v913
    %v919 = vmul.f32 %v877, %v915
    %v922 = vrot.slane %v918, 6
    %v923 = vrot.slane %v919, 5
    %v924 = vsel %vm229, %v923, %v922
    %925 = vrot.lane.b32.xlu0 %v924, 32
    %v926 = vpop.permute.xlu0 %925
    %v927 = vsel %vm122, %v926, 0
    %929 = vmatpush.msra.mxu0 0.0
    %930 = vmatpush.msra.mxu0 0.0
    %931 = vmatpush.msra.mxu0 0.0
    %932 = vmatpush.msra.mxu0 0.0
    %933 = vmatpush.msra.mxu0 0.0
    %934 = vmatpush.msra.mxu0 0.0
    %935 = vmatpush.msra.mxu0 0.0
    %936 = vmatpush.msra.mxu0 0.0
    %937 = vmatpush.msra.mxu0 0.0
    %938 = vmatpush.msra.mxu0 0.0
    %939 = vmatpush.msra.mxu0 0.0
    %940 = vmatpush.msra.mxu0 0.0
    %941 = vmatpush.msra.mxu0 %v85
    %942 = vmatpush.msra.mxu0 %v84
    %943 = vmatpush.msra.mxu0 %v83
    %944 = vmatpush.msra.mxu0 %v82
    %945 = vmatmul.f32.gmra.mxu0 %v927
    %v946 = vpop.f32.mrf.mxu0
    %v947 = vadd.f32 0.0, %v946
    %948 = vdwg.mxu0
    %v950 = vrot.slane %v947, 1
    %v951 = vrot.slane %v947, 2
    %v954 = vadd.f32 %v117, %v950
    %v955 = vadd.f32 %v120, %v951
    %v956 = vxor.u32 %v954, 2147483648
    %v957 = vxor.u32 %v955, 2147483648
    %v958 = vmul.f32 %v956, 1.442695
    %v959 = vpow.pop %v958
    %v960 = vmul.f32 %v957, 1.442695
    %v961 = vpow.pop %v960
    %v962 = vadd.f32 %v959, 1.0
    %v963 = vadd.f32 %v961, 1.0
    %v964 = vrcp.pop %v962
    %v965 = vmul.f32 %v962, %v964
    %v966 = vsub.f32 1.0, %v965
    %v967 = vmul.f32 %v964, %v966
    %v968 = vadd.f32 %v964, %v967
    %vm969 = vweird.f32 %v962
    %vm970 = vweird.f32 %v964
    %vm971 = vmor %vm969, %vm970
    %v972 = vsel %vm971, %v964, %v968
    %v973 = vand.u32 2147483647, %v962
    %vm974 = vcmp.eq.f32.partialorder %v973, 8.507059e+37
    %v975 = vand.u32 %v962, 2147483648
    %v976 = vor.u32 1.1754944e-38, %v975
    %v977 = vsel %vm974, %v976, %v972
    %v978 = vmul.f32 1.0, %v977
    %v979 = vrcp.pop %v963
    %v980 = vmul.f32 %v963, %v979
    %v981 = vsub.f32 1.0, %v980
    %v982 = vmul.f32 %v979, %v981
    %v983 = vadd.f32 %v979, %v982
    %vm984 = vweird.f32 %v963
    %vm985 = vweird.f32 %v979
    %vm986 = vmor %vm984, %vm985
    %v987 = vsel %vm986, %v979, %v983
    %v988 = vand.u32 2147483647, %v963
    %vm989 = vcmp.eq.f32.partialorder %v988, 8.507059e+37
    %v990 = vand.u32 %v963, 2147483648
    %v991 = vor.u32 1.1754944e-38, %v990
    %v992 = vsel %vm989, %v991, %v987
    %v993 = vmul.f32 1.0, %v992
    %v994 = vtanh.pop %v954
    %v995 = vtanh.pop %v955
    %v998 = vrot.slane %v906, 7
    %v999 = vrot.slane %v907, 7
    %v1002 = vmul.f32 %v978, %v998
    %v1003 = vmul.f32 %v993, %v999
    %1006 = vrot.lane.b32.xlu0 %v994, 64
    %v1007 = vpop.permute.xlu0 %1006
    %1008 = vrot.lane.b32.xlu0 %v995, 64
    %v1009 = vpop.permute.xlu0 %1008
    %v1012 = vmul.f32 %v978, %v1007
    %v1013 = vmul.f32 %v993, %v1009
    %1016 = vrot.lane.b32.xlu0 %v1012, 32
    %v1017 = vpop.permute.xlu0 %1016
    %1018 = vrot.lane.b32.xlu0 %v1013, 32
    %v1019 = vpop.permute.xlu0 %1018
    %v1022 = vadd.f32 %v1002, %v1017
    %v1023 = vadd.f32 %v1003, %v1019
    %v1024 = vtanh.pop %v1022
    %v1025 = vtanh.pop %v1023
    %1028 = vrot.lane.b32.xlu0 %v1024, 64
    %v1029 = vpop.permute.xlu0 %1028
    %1030 = vrot.lane.b32.xlu0 %v1025, 64
    %v1031 = vpop.permute.xlu0 %1030
    %v1034 = vmul.f32 %v978, %v1029
    %v1035 = vmul.f32 %v993, %v1031
    %v1037 = vrot.slane %v339, 7
    %v1038 = vrot.slane %v340, 6
    %vm1039 = vcmask 1043459
    %v1040 = vsel %vm1039, %v1038, %v1037
    %v1042 = vrot.slane %v454, 6
    %v1043 = vrot.slane %v455, 5
    %vm1044 = vcmask 1045509
    %v1045 = vsel %vm1044, %v1043, %v1042
    %v1047 = vrot.slane %v570, 5
    %v1048 = vrot.slane %v571, 4
    %vm1049 = vcmask 1047559
    %v1050 = vsel %vm1049, %v1048, %v1047
    %v1053 = vrot.slane %v802, 3
    %v1054 = vrot.slane %v803, 2
    %v1055 = vsel %vm1039, %v1054, %v1053
    %v1057 = vrot.slane %v918, 2
    %v1058 = vrot.slane %v919, 1
    %v1059 = vsel %vm1044, %v1058, %v1057
    %v1063 = vrot.slane %v1034, 1
    %v1064 = vsel %vm1049, %v1035, %v1063
    %vm1066 = vcmask 1041408
    %v1067 = vsel %vm1066, %v230, %v1040
    %vm1068 = vcmask 1043456
    %v1069 = vsel %vm1068, %v1067, %v1045
    %vm1070 = vcmask 1045504
    %v1071 = vsel %vm1070, %v1069, %v1050
    %v1072 = vsel %vm1066, %v692, %v1055
    %v1073 = vsel %vm1068, %v1072, %v1059
    %v1074 = vsel %vm1070, %v1073, %v1064
    %v1075 = vld [vmem:[#allocation5] sm:$0xff]
    %v1076 = vld [vmem:[#allocation5 + $0x8] sm:$0xff]
    %v1077 = vld [vmem:[#allocation5 + $0x10] sm:$0xff]
    %v1078 = vld [vmem:[#allocation5 + $0x18] sm:$0xff]
    %v1079 = vld [vmem:[#allocation7] sm:$0xff]
    %v1080 = vld [vmem:[#allocation7 + $0x8] sm:$0xff]
    %v1081 = vld [vmem:[#allocation7 + $0x10] sm:$0xff]
    %v1082 = vld [vmem:[#allocation7 + $0x18] sm:$0xff]
    %v1083 = vld [vmem:[%s6] sm:$0x1]
    %v1085 = vperm.slane %v1083, 0
    %1089 = vrot.lane.b32.xlu0 %v1071, 32
    %v1090 = vpop.permute.xlu0 %1089
    %1091 = vrot.lane.b32.xlu0 %v1074, 32
    %v1092 = vpop.permute.xlu0 %1091
    %v1093 = vsel %vm122, %v1090, 0
    %v1095 = vsel %vm122, %v1092, 0
    %1097 = vmatpush.msra.mxu0 0.0
    %1098 = vmatpush.msra.mxu0 0.0
    %1099 = vmatpush.msra.mxu0 0.0
    %1100 = vmatpush.msra.mxu0 0.0
    %1101 = vmatpush.msra.mxu0 0.0
    %1102 = vmatpush.msra.mxu0 0.0
    %1103 = vmatpush.msra.mxu0 0.0
    %1104 = vmatpush.msra.mxu0 0.0
    %1105 = vmatpush.msra.mxu0 0.0
    %1106 = vmatpush.msra.mxu0 0.0
    %1107 = vmatpush.msra.mxu0 0.0
    %1108 = vmatpush.msra.mxu0 0.0
    %1109 = vmatpush.msra.mxu0 %v1078
    %1110 = vmatpush.msra.mxu0 %v1077
    %1111 = vmatpush.msra.mxu0 %v1076
    %1112 = vmatpush.msra.mxu0 %v1075
    %1113 = vmatmul.f32.gmra.mxu0 %v1093
    %v1114 = vpop.f32.mrf.mxu0
    %v1115 = vadd.f32 %v1085, %v1114
    %1116 = vmatmul.f32.gmra.mxu0 %v1095
    %v1117 = vpop.f32.mrf.mxu0
    %v1118 = vadd.f32 %v1085, %v1117
    %1119 = vdwg.mxu0
    %1120 = vmatpush.msra.mxu0 0.0
    %1121 = vmatpush.msra.mxu0 0.0
    %1122 = vmatpush.msra.mxu0 0.0
    %1123 = vmatpush.msra.mxu0 0.0
    %1124 = vmatpush.msra.mxu0 0.0
    %1125 = vmatpush.msra.mxu0 0.0
    %1126 = vmatpush.msra.mxu0 0.0
    %1127 = vmatpush.msra.mxu0 0.0
    %1128 = vmatpush.msra.mxu0 0.0
    %1129 = vmatpush.msra.mxu0 0.0
    %1130 = vmatpush.msra.mxu0 0.0
    %1131 = vmatpush.msra.mxu0 0.0
    %1132 = vmatpush.msra.mxu0 %v1082
    %1133 = vmatpush.msra.mxu0 %v1081
    %1134 = vmatpush.msra.mxu0 %v1080
    %1135 = vmatpush.msra.mxu0 %v1079
    %1136 = vmatmul.f32.gmra.mxu0 %v124
    %v1137 = vpop.f32.mrf.mxu0
    %v1138 = vadd.f32 0.0, %v1137
    %1139 = vdwg.mxu0
    %v1140 = vadd.f32 %v1115, %v1138
    %v1141 = vxor.u32 %v1140, 2147483648
    %v1142 = vmul.f32 %v1141, 1.442695
    %v1143 = vpow.pop %v1142
    %v1144 = vadd.f32 %v1143, 1.0
    %v1145 = vrcp.pop %v1144
    %v1146 = vmul.f32 %v1144, %v1145
    %v1147 = vsub.f32 1.0, %v1146
    %v1148 = vmul.f32 %v1145, %v1147
    %v1149 = vadd.f32 %v1145, %v1148
    %vm1150 = vweird.f32 %v1144
    %vm1151 = vweird.f32 %v1145
    %vm1152 = vmor %vm1150, %vm1151
    %v1153 = vsel %vm1152, %v1145, %v1149
    %v1154 = vand.u32 2147483647, %v1144
    %vm1155 = vcmp.eq.f32.partialorder %v1154, 8.507059e+37
    %v1156 = vand.u32 %v1144, 2147483648
    %v1157 = vor.u32 1.1754944e-38, %v1156
    %v1158 = vsel %vm1155, %v1157, %v1153
    %v1159 = vmul.f32 1.0, %v1158
    %v1160 = vtanh.pop %v1140
    %v1161 = vmul.f32 %v1159, 0.0
    %1163 = vrot.lane.b32.xlu0 %v1160, 64
    %v1164 = vpop.permute.xlu0 %1163
    %v1166 = vmul.f32 %v1159, %v1164
    %1168 = vrot.lane.b32.xlu0 %v1166, 32
    %v1169 = vpop.permute.xlu0 %1168
    %v1171 = vadd.f32 %v1161, %v1169
    %v1172 = vtanh.pop %v1171
    %1174 = vrot.lane.b32.xlu0 %v1172, 64
    %v1175 = vpop.permute.xlu0 %1174
    %v1177 = vmul.f32 %v1159, %v1175
    %1179 = vrot.lane.b32.xlu0 %v1177, 32
    %v1180 = vpop.permute.xlu0 %1179
    %v1181 = vsel %vm122, %v1180, 0
    %1183 = vmatpush.msra.mxu0 0.0
    %1184 = vmatpush.msra.mxu0 0.0
    %1185 = vmatpush.msra.mxu0 0.0
    %1186 = vmatpush.msra.mxu0 0.0
    %1187 = vmatpush.msra.mxu0 0.0
    %1188 = vmatpush.msra.mxu0 0.0
    %1189 = vmatpush.msra.mxu0 0.0
    %1190 = vmatpush.msra.mxu0 0.0
    %1191 = vmatpush.msra.mxu0 0.0
    %1192 = vmatpush.msra.mxu0 0.0
    %1193 = vmatpush.msra.mxu0 0.0
    %1194 = vmatpush.msra.mxu0 0.0
    %1195 = vmatpush.msra.mxu0 %v1082
    %1196 = vmatpush.msra.mxu0 %v1081
    %1197 = vmatpush.msra.mxu0 %v1080
    %1198 = vmatpush.msra.mxu0 %v1079
    %1199 = vmatmul.f32.gmra.mxu0 %v1181
    %v1200 = vpop.f32.mrf.mxu0
    %v1201 = vadd.f32 0.0, %v1200
    %1202 = vdwg.mxu0
    %v1204 = vrot.slane %v1201, 6
    %v1206 = vadd.f32 %v1115, %v1204
    %v1207 = vxor.u32 %v1206, 2147483648
    %v1208 = vmul.f32 %v1207, 1.442695
    %v1209 = vpow.pop %v1208
    %v1210 = vadd.f32 %v1209, 1.0
    %v1211 = vrcp.pop %v1210
    %v1212 = vmul.f32 %v1210, %v1211
    %v1213 = vsub.f32 1.0, %v1212
    %v1214 = vmul.f32 %v1211, %v1213
    %v1215 = vadd.f32 %v1211, %v1214
    %vm1216 = vweird.f32 %v1210
    %vm1217 = vweird.f32 %v1211
    %vm1218 = vmor %vm1216, %vm1217
    %v1219 = vsel %vm1218, %v1211, %v1215
    %v1220 = vand.u32 2147483647, %v1210
    %vm1221 = vcmp.eq.f32.partialorder %v1220, 8.507059e+37
    %v1222 = vand.u32 %v1210, 2147483648
    %v1223 = vor.u32 1.1754944e-38, %v1222
    %v1224 = vsel %vm1221, %v1223, %v1219
    %v1225 = vmul.f32 1.0, %v1224
    %v1226 = vtanh.pop %v1206
    %v1228 = vrot.slane %v1171, 6
    %v1230 = vmul.f32 %v1225, %v1228
    %1232 = vrot.lane.b32.xlu0 %v1226, 64
    %v1233 = vpop.permute.xlu0 %1232
    %v1235 = vmul.f32 %v1225, %v1233
    %1237 = vrot.lane.b32.xlu0 %v1235, 32
    %v1238 = vpop.permute.xlu0 %1237
    %v1240 = vadd.f32 %v1230, %v1238
    %v1241 = vtanh.pop %v1240
    %1243 = vrot.lane.b32.xlu0 %v1241, 64
    %v1244 = vpop.permute.xlu0 %1243
    %v1246 = vmul.f32 %v1225, %v1244
    %v1248 = vrot.slane %v1246, 2
    %1249 = vrot.lane.b32.xlu0 %v1248, 32
    %v1250 = vpop.permute.xlu0 %1249
    %v1251 = vsel %vm122, %v1250, 0
    %1253 = vmatpush.msra.mxu0 0.0
    %1254 = vmatpush.msra.mxu0 0.0
    %1255 = vmatpush.msra.mxu0 0.0
    %1256 = vmatpush.msra.mxu0 0.0
    %1257 = vmatpush.msra.mxu0 0.0
    %1258 = vmatpush.msra.mxu0 0.0
    %1259 = vmatpush.msra.mxu0 0.0
    %1260 = vmatpush.msra.mxu0 0.0
    %1261 = vmatpush.msra.mxu0 0.0
    %1262 = vmatpush.msra.mxu0 0.0
    %1263 = vmatpush.msra.mxu0 0.0
    %1264 = vmatpush.msra.mxu0 0.0
    %1265 = vmatpush.msra.mxu0 %v1082
    %1266 = vmatpush.msra.mxu0 %v1081
    %1267 = vmatpush.msra.mxu0 %v1080
    %1268 = vmatpush.msra.mxu0 %v1079
    %1269 = vmatmul.f32.gmra.mxu0 %v1251
    %v1270 = vpop.f32.mrf.mxu0
    %v1271 = vadd.f32 0.0, %v1270
    %1272 = vdwg.mxu0
    %v1274 = vrot.slane %v1271, 4
    %v1276 = vadd.f32 %v1115, %v1274
    %v1277 = vxor.u32 %v1276, 2147483648
    %v1278 = vmul.f32 %v1277, 1.442695
    %v1279 = vpow.pop %v1278
    %v1280 = vadd.f32 %v1279, 1.0
    %v1281 = vrcp.pop %v1280
    %v1282 = vmul.f32 %v1280, %v1281
    %v1283 = vsub.f32 1.0, %v1282
    %v1284 = vmul.f32 %v1281, %v1283
    %v1285 = vadd.f32 %v1281, %v1284
    %vm1286 = vweird.f32 %v1280
    %vm1287 = vweird.f32 %v1281
    %vm1288 = vmor %vm1286, %vm1287
    %v1289 = vsel %vm1288, %v1281, %v1285
    %v1290 = vand.u32 2147483647, %v1280
    %vm1291 = vcmp.eq.f32.partialorder %v1290, 8.507059e+37
    %v1292 = vand.u32 %v1280, 2147483648
    %v1293 = vor.u32 1.1754944e-38, %v1292
    %v1294 = vsel %vm1291, %v1293, %v1289
    %v1295 = vmul.f32 1.0, %v1294
    %v1296 = vtanh.pop %v1276
    %v1298 = vrot.slane %v1240, 6
    %v1300 = vmul.f32 %v1295, %v1298
    %1302 = vrot.lane.b32.xlu0 %v1296, 64
    %v1303 = vpop.permute.xlu0 %1302
    %v1305 = vmul.f32 %v1295, %v1303
    %1307 = vrot.lane.b32.xlu0 %v1305, 32
    %v1308 = vpop.permute.xlu0 %1307
    %v1310 = vadd.f32 %v1300, %v1308
    %v1311 = vtanh.pop %v1310
    %1313 = vrot.lane.b32.xlu0 %v1311, 64
    %v1314 = vpop.permute.xlu0 %1313
    %v1316 = vmul.f32 %v1295, %v1314
    %v1318 = vrot.slane %v1316, 4
    %1319 = vrot.lane.b32.xlu0 %v1318, 32
    %v1320 = vpop.permute.xlu0 %1319
    %v1321 = vsel %vm122, %v1320, 0
    %1323 = vmatpush.msra.mxu0 0.0
    %1324 = vmatpush.msra.mxu0 0.0
    %1325 = vmatpush.msra.mxu0 0.0
    %1326 = vmatpush.msra.mxu0 0.0
    %1327 = vmatpush.msra.mxu0 0.0
    %1328 = vmatpush.msra.mxu0 0.0
    %1329 = vmatpush.msra.mxu0 0.0
    %1330 = vmatpush.msra.mxu0 0.0
    %1331 = vmatpush.msra.mxu0 0.0
    %1332 = vmatpush.msra.mxu0 0.0
    %1333 = vmatpush.msra.mxu0 0.0
    %1334 = vmatpush.msra.mxu0 0.0
    %1335 = vmatpush.msra.mxu0 %v1082
    %1336 = vmatpush.msra.mxu0 %v1081
    %1337 = vmatpush.msra.mxu0 %v1080
    %1338 = vmatpush.msra.mxu0 %v1079
    %1339 = vmatmul.f32.gmra.mxu0 %v1321
    %v1340 = vpop.f32.mrf.mxu0
    %v1341 = vadd.f32 0.0, %v1340
    %1342 = vdwg.mxu0
    %v1344 = vrot.slane %v1341, 2
    %v1346 = vadd.f32 %v1115, %v1344
    %v1347 = vxor.u32 %v1346, 2147483648
    %v1348 = vmul.f32 %v1347, 1.442695
    %v1349 = vpow.pop %v1348
    %v1350 = vadd.f32 %v1349, 1.0
    %v1351 = vrcp.pop %v1350
    %v1352 = vmul.f32 %v1350, %v1351
    %v1353 = vsub.f32 1.0, %v1352
    %v1354 = vmul.f32 %v1351, %v1353
    %v1355 = vadd.f32 %v1351, %v1354
    %vm1356 = vweird.f32 %v1350
    %vm1357 = vweird.f32 %v1351
    %vm1358 = vmor %vm1356, %vm1357
    %v1359 = vsel %vm1358, %v1351, %v1355
    %v1360 = vand.u32 2147483647, %v1350
    %vm1361 = vcmp.eq.f32.partialorder %v1360, 8.507059e+37
    %v1362 = vand.u32 %v1350, 2147483648
    %v1363 = vor.u32 1.1754944e-38, %v1362
    %v1364 = vsel %vm1361, %v1363, %v1359
    %v1365 = vmul.f32 1.0, %v1364
    %v1366 = vtanh.pop %v1346
    %v1368 = vrot.slane %v1310, 6
    %v1370 = vmul.f32 %v1365, %v1368
    %1372 = vrot.lane.b32.xlu0 %v1366, 64
    %v1373 = vpop.permute.xlu0 %1372
    %v1375 = vmul.f32 %v1365, %v1373
    %1377 = vrot.lane.b32.xlu0 %v1375, 32
    %v1378 = vpop.permute.xlu0 %1377
    %v1380 = vadd.f32 %v1370, %v1378
    %v1381 = vtanh.pop %v1380
    %1383 = vrot.lane.b32.xlu0 %v1381, 64
    %v1384 = vpop.permute.xlu0 %1383
    %v1386 = vmul.f32 %v1365, %v1384
    %v1388 = vrot.slane %v1386, 6
    %1389 = vrot.lane.b32.xlu0 %v1388, 32
    %v1390 = vpop.permute.xlu0 %1389
    %v1391 = vsel %vm122, %v1390, 0
    %1393 = vmatpush.msra.mxu0 0.0
    %1394 = vmatpush.msra.mxu0 0.0
    %1395 = vmatpush.msra.mxu0 0.0
    %1396 = vmatpush.msra.mxu0 0.0
    %1397 = vmatpush.msra.mxu0 0.0
    %1398 = vmatpush.msra.mxu0 0.0
    %1399 = vmatpush.msra.mxu0 0.0
    %1400 = vmatpush.msra.mxu0 0.0
    %1401 = vmatpush.msra.mxu0 0.0
    %1402 = vmatpush.msra.mxu0 0.0
    %1403 = vmatpush.msra.mxu0 0.0
    %1404 = vmatpush.msra.mxu0 0.0
    %1405 = vmatpush.msra.mxu0 %v1082
    %1406 = vmatpush.msra.mxu0 %v1081
    %1407 = vmatpush.msra.mxu0 %v1080
    %1408 = vmatpush.msra.mxu0 %v1079
    %1409 = vmatmul.f32.gmra.mxu0 %v1391
    %v1410 = vpop.f32.mrf.mxu0
    %v1411 = vadd.f32 0.0, %v1410
    %1412 = vdwg.mxu0
    %v1413 = vadd.f32 %v1118, %v1411
    %v1414 = vxor.u32 %v1413, 2147483648
    %v1415 = vmul.f32 %v1414, 1.442695
    %v1416 = vpow.pop %v1415
    %v1417 = vadd.f32 %v1416, 1.0
    %v1418 = vrcp.pop %v1417
    %v1419 = vmul.f32 %v1417, %v1418
    %v1420 = vsub.f32 1.0, %v1419
    %v1421 = vmul.f32 %v1418, %v1420
    %v1422 = vadd.f32 %v1418, %v1421
    %vm1423 = vweird.f32 %v1417
    %vm1424 = vweird.f32 %v1418
    %vm1425 = vmor %vm1423, %vm1424
    %v1426 = vsel %vm1425, %v1418, %v1422
    %v1427 = vand.u32 2147483647, %v1417
    %vm1428 = vcmp.eq.f32.partialorder %v1427, 8.507059e+37
    %v1429 = vand.u32 %v1417, 2147483648
    %v1430 = vor.u32 1.1754944e-38, %v1429
    %v1431 = vsel %vm1428, %v1430, %v1426
    %v1432 = vmul.f32 1.0, %v1431
    %v1433 = vtanh.pop %v1413
    %v1435 = vrot.slane %v1380, 6
    %v1437 = vmul.f32 %v1432, %v1435
    %1439 = vrot.lane.b32.xlu0 %v1433, 64
    %v1440 = vpop.permute.xlu0 %1439
    %v1442 = vmul.f32 %v1432, %v1440
    %1444 = vrot.lane.b32.xlu0 %v1442, 32
    %v1445 = vpop.permute.xlu0 %1444
    %v1447 = vadd.f32 %v1437, %v1445
    %v1448 = vtanh.pop %v1447
    %1450 = vrot.lane.b32.xlu0 %v1448, 64
    %v1451 = vpop.permute.xlu0 %1450
    %v1453 = vmul.f32 %v1432, %v1451
    %1455 = vrot.lane.b32.xlu0 %v1453, 32
    %v1456 = vpop.permute.xlu0 %1455
    %v1457 = vsel %vm122, %v1456, 0
    %1459 = vmatpush.msra.mxu0 0.0
    %1460 = vmatpush.msra.mxu0 0.0
    %1461 = vmatpush.msra.mxu0 0.0
    %1462 = vmatpush.msra.mxu0 0.0
    %1463 = vmatpush.msra.mxu0 0.0
    %1464 = vmatpush.msra.mxu0 0.0
    %1465 = vmatpush.msra.mxu0 0.0
    %1466 = vmatpush.msra.mxu0 0.0
    %1467 = vmatpush.msra.mxu0 0.0
    %1468 = vmatpush.msra.mxu0 0.0
    %1469 = vmatpush.msra.mxu0 0.0
    %1470 = vmatpush.msra.mxu0 0.0
    %1471 = vmatpush.msra.mxu0 %v1082
    %1472 = vmatpush.msra.mxu0 %v1081
    %1473 = vmatpush.msra.mxu0 %v1080
    %1474 = vmatpush.msra.mxu0 %v1079
    %1475 = vmatmul.f32.gmra.mxu0 %v1457
    %v1476 = vpop.f32.mrf.mxu0
    %v1477 = vadd.f32 0.0, %v1476
    %1478 = vdwg.mxu0
    %v1480 = vrot.slane %v1477, 6
    %v1482 = vadd.f32 %v1118, %v1480
    %v1483 = vxor.u32 %v1482, 2147483648
    %v1484 = vmul.f32 %v1483, 1.442695
    %v1485 = vpow.pop %v1484
    %v1486 = vadd.f32 %v1485, 1.0
    %v1487 = vrcp.pop %v1486
    %v1488 = vmul.f32 %v1486, %v1487
    %v1489 = vsub.f32 1.0, %v1488
    %v1490 = vmul.f32 %v1487, %v1489
    %v1491 = vadd.f32 %v1487, %v1490
    %vm1492 = vweird.f32 %v1486
    %vm1493 = vweird.f32 %v1487
    %vm1494 = vmor %vm1492, %vm1493
    %v1495 = vsel %vm1494, %v1487, %v1491
    %v1496 = vand.u32 2147483647, %v1486
    %vm1497 = vcmp.eq.f32.partialorder %v1496, 8.507059e+37
    %v1498 = vand.u32 %v1486, 2147483648
    %v1499 = vor.u32 1.1754944e-38, %v1498
    %v1500 = vsel %vm1497, %v1499, %v1495
    %v1501 = vmul.f32 1.0, %v1500
    %v1502 = vtanh.pop %v1482
    %v1504 = vrot.slane %v1447, 6
    %v1506 = vmul.f32 %v1501, %v1504
    %1508 = vrot.lane.b32.xlu0 %v1502, 64
    %v1509 = vpop.permute.xlu0 %1508
    %v1511 = vmul.f32 %v1501, %v1509
    %1513 = vrot.lane.b32.xlu0 %v1511, 32
    %v1514 = vpop.permute.xlu0 %1513
    %v1516 = vadd.f32 %v1506, %v1514
    %v1517 = vtanh.pop %v1516
    %1519 = vrot.lane.b32.xlu0 %v1517, 64
    %v1520 = vpop.permute.xlu0 %1519
    %v1522 = vmul.f32 %v1501, %v1520
    %v1524 = vrot.slane %v1522, 2
    %1525 = vrot.lane.b32.xlu0 %v1524, 32
    %v1526 = vpop.permute.xlu0 %1525
    %v1527 = vsel %vm122, %v1526, 0
    %1529 = vmatpush.msra.mxu0 0.0
    %1530 = vmatpush.msra.mxu0 0.0
    %1531 = vmatpush.msra.mxu0 0.0
    %1532 = vmatpush.msra.mxu0 0.0
    %1533 = vmatpush.msra.mxu0 0.0
    %1534 = vmatpush.msra.mxu0 0.0
    %1535 = vmatpush.msra.mxu0 0.0
    %1536 = vmatpush.msra.mxu0 0.0
    %1537 = vmatpush.msra.mxu0 0.0
    %1538 = vmatpush.msra.mxu0 0.0
    %1539 = vmatpush.msra.mxu0 0.0
    %1540 = vmatpush.msra.mxu0 0.0
    %1541 = vmatpush.msra.mxu0 %v1082
    %1542 = vmatpush.msra.mxu0 %v1081
    %1543 = vmatpush.msra.mxu0 %v1080
    %1544 = vmatpush.msra.mxu0 %v1079
    %1545 = vmatmul.f32.gmra.mxu0 %v1527
    %v1546 = vpop.f32.mrf.mxu0
    %v1547 = vadd.f32 0.0, %v1546
    %1548 = vdwg.mxu0
    %v1550 = vrot.slane %v1547, 4
    %v1552 = vadd.f32 %v1118, %v1550
    %v1553 = vxor.u32 %v1552, 2147483648
    %v1554 = vmul.f32 %v1553, 1.442695
    %v1555 = vpow.pop %v1554
    %v1556 = vadd.f32 %v1555, 1.0
    %v1557 = vrcp.pop %v1556
    %v1558 = vmul.f32 %v1556, %v1557
    %v1559 = vsub.f32 1.0, %v1558
    %v1560 = vmul.f32 %v1557, %v1559
    %v1561 = vadd.f32 %v1557, %v1560
    %vm1562 = vweird.f32 %v1556
    %vm1563 = vweird.f32 %v1557
    %vm1564 = vmor %vm1562, %vm1563
    %v1565 = vsel %vm1564, %v1557, %v1561
    %v1566 = vand.u32 2147483647, %v1556
    %vm1567 = vcmp.eq.f32.partialorder %v1566, 8.507059e+37
    %v1568 = vand.u32 %v1556, 2147483648
    %v1569 = vor.u32 1.1754944e-38, %v1568
    %v1570 = vsel %vm1567, %v1569, %v1565
    %v1571 = vmul.f32 1.0, %v1570
    %v1572 = vtanh.pop %v1552
    %v1574 = vrot.slane %v1516, 6
    %v1576 = vmul.f32 %v1571, %v1574
    %1578 = vrot.lane.b32.xlu0 %v1572, 64
    %v1579 = vpop.permute.xlu0 %1578
    %v1581 = vmul.f32 %v1571, %v1579
    %1583 = vrot.lane.b32.xlu0 %v1581, 32
    %v1584 = vpop.permute.xlu0 %1583
    %v1586 = vadd.f32 %v1576, %v1584
    %v1587 = vtanh.pop %v1586
    %1589 = vrot.lane.b32.xlu0 %v1587, 64
    %v1590 = vpop.permute.xlu0 %1589
    %v1592 = vmul.f32 %v1571, %v1590
    %v1594 = vrot.slane %v1592, 4
    %1595 = vrot.lane.b32.xlu0 %v1594, 32
    %v1596 = vpop.permute.xlu0 %1595
    %v1597 = vsel %vm122, %v1596, 0
    %1599 = vmatpush.msra.mxu0 0.0
    %1600 = vmatpush.msra.mxu0 0.0
    %1601 = vmatpush.msra.mxu0 0.0
    %1602 = vmatpush.msra.mxu0 0.0
    %1603 = vmatpush.msra.mxu0 0.0
    %1604 = vmatpush.msra.mxu0 0.0
    %1605 = vmatpush.msra.mxu0 0.0
    %1606 = vmatpush.msra.mxu0 0.0
    %1607 = vmatpush.msra.mxu0 0.0
    %1608 = vmatpush.msra.mxu0 0.0
    %1609 = vmatpush.msra.mxu0 0.0
    %1610 = vmatpush.msra.mxu0 0.0
    %1611 = vmatpush.msra.mxu0 %v1082
    %1612 = vmatpush.msra.mxu0 %v1081
    %1613 = vmatpush.msra.mxu0 %v1080
    %1614 = vmatpush.msra.mxu0 %v1079
    %1615 = vmatmul.f32.gmra.mxu0 %v1597
    %v1616 = vpop.f32.mrf.mxu0
    %v1617 = vadd.f32 0.0, %v1616
    %1618 = vdwg.mxu0
    %v1620 = vrot.slane %v1617, 2
    %v1622 = vadd.f32 %v1118, %v1620
    %v1623 = vxor.u32 %v1622, 2147483648
    %v1624 = vmul.f32 %v1623, 1.442695
    %v1625 = vpow.pop %v1624
    %v1626 = vadd.f32 %v1625, 1.0
    %v1627 = vrcp.pop %v1626
    %v1628 = vmul.f32 %v1626, %v1627
    %v1629 = vsub.f32 1.0, %v1628
    %v1630 = vmul.f32 %v1627, %v1629
    %v1631 = vadd.f32 %v1627, %v1630
    %vm1632 = vweird.f32 %v1626
    %vm1633 = vweird.f32 %v1627
    %vm1634 = vmor %vm1632, %vm1633
    %v1635 = vsel %vm1634, %v1627, %v1631
    %v1636 = vand.u32 2147483647, %v1626
    %vm1637 = vcmp.eq.f32.partialorder %v1636, 8.507059e+37
    %v1638 = vand.u32 %v1626, 2147483648
    %v1639 = vor.u32 1.1754944e-38, %v1638
    %v1640 = vsel %vm1637, %v1639, %v1635
    %v1641 = vmul.f32 1.0, %v1640
    %v1642 = vtanh.pop %v1622
    %v1644 = vrot.slane %v1586, 6
    %v1646 = vmul.f32 %v1641, %v1644
    %1648 = vrot.lane.b32.xlu0 %v1642, 64
    %v1649 = vpop.permute.xlu0 %1648
    %v1651 = vmul.f32 %v1641, %v1649
    %1653 = vrot.lane.b32.xlu0 %v1651, 32
    %v1654 = vpop.permute.xlu0 %1653
    %v1656 = vadd.f32 %v1646, %v1654
    %v1657 = vtanh.pop %v1656
    %1659 = vrot.lane.b32.xlu0 %v1657, 64
    %v1660 = vpop.permute.xlu0 %1659
    %v1662 = vmul.f32 %v1641, %v1660
    %v1663 = vld [vmem:[%s7] sm:$0xff]
    %v1664 = vld [vmem:[%s7 + $0x8] sm:$0xff]
    %v1665 = vld [vmem:[%s7 + $0x10] sm:$0xff]
    %v1666 = vld [vmem:[%s7 + $0x18] sm:$0xff]
    %v1667 = vld [vmem:[%s8] sm:$0x1]
    %v1669 = vperm.slane %v1667, 0
    %v1672 = vrot.slane %v1662, 6
    %1673 = vrot.lane.b32.xlu0 %v1672, 32
    %v1674 = vpop.permute.xlu0 %1673
    %v1675 = vsel %vm122, %v1674, 0
    %1677 = vmatpush.msra.mxu0 0.0
    %1678 = vmatpush.msra.mxu0 0.0
    %1679 = vmatpush.msra.mxu0 0.0
    %1680 = vmatpush.msra.mxu0 0.0
    %1681 = vmatpush.msra.mxu0 0.0
    %1682 = vmatpush.msra.mxu0 0.0
    %1683 = vmatpush.msra.mxu0 0.0
    %1684 = vmatpush.msra.mxu0 0.0
    %1685 = vmatpush.msra.mxu0 0.0
    %1686 = vmatpush.msra.mxu0 0.0
    %1687 = vmatpush.msra.mxu0 0.0
    %1688 = vmatpush.msra.mxu0 0.0
    %1689 = vmatpush.msra.mxu0 %v1666
    %1690 = vmatpush.msra.mxu0 %v1665
    %1691 = vmatpush.msra.mxu0 %v1664
    %1692 = vmatpush.msra.mxu0 %v1663
    %1693 = vmatmul.f32.gmra.mxu0 %v1675
    %v1694 = vpop.f32.mrf.mxu0
    %v1695 = vadd.f32 %v1669, %v1694
    %1696 = vdwg.mxu0
    %vm1697 = vcmask 74752
    %1698 = vst.msk [vmem:[#allocation8] sm:$0x3] %vm1697, %v1695
    // Predicated region
    $region50: #{tpu_custom_call.1} parent=1 // pred_check
      _
    $region51: #{tpu_custom_call.1} parent=1 // pred_check_branch
      %1700 = sbr.rel (0) target = $region53
    $region52: #{tpu_custom_call.1} parent=1 // pred_region
      %1702 = vsyncadd [#allocation4], 0
      %s1704 = sshll.u32 [#allocation8], 4
      %s1705 = int_to_ptr.vmem [resolvable:$true] %s1704
      %s1706 = sshll.u32 %s9, 4
      %s1707 = int_to_ptr.hbm [resolvable:$true] %s1706
      %1709 = dma.vmem_to_hbm [thread:$0]  %s1705, 32, %s1707, [#allocation4]
    $region53: #{tpu_custom_call.1} parent=1 // pred_fallthru
      _
    // Predicated region
    $region54: #{tpu_custom_call.1} parent=1 // pred_check
      _
    $region55: #{tpu_custom_call.1} parent=1 // pred_check_branch
      %1711 = sbr.rel (0) target = $region57
    $region56: #{tpu_custom_call.1} parent=1 // pred_region
      %1713 = dma.done [#allocation4], 32
    $region57: #{tpu_custom_call.1} parent=1 // pred_fallthru
      _
    %1714 = vsyncpa [#allocation3], 1
    %1715 = vsyncpa [#allocation6], 1
    %1716 = vsyncpa [#allocation4], 1

</llo_original>
